<compile_context>
chip_gen: v5e
topology: v5e:2x2
jax: 0.10.0
libtpu: 0.0.40
codegen_flags: <defaults>
</compile_context>

<pallas_src>
import functools

import jax
import jax.numpy as jnp
from jax.experimental import pallas as pl
from jax.experimental.pallas import tpu as pltpu


def _lstm_gates(gates, c, H):
    """PyTorch LSTMCell nonlinearity. gates: [1, 4H] (i, f, g, o order), c: [1, H]."""
    sg = jax.nn.sigmoid(gates)   # full-width EUP op on the 4H-lane gates vreg
    th = jnp.tanh(gates)
    i = sg[:, 0 * H:1 * H]
    f = sg[:, 1 * H:2 * H]
    g = th[:, 2 * H:3 * H]
    o = sg[:, 3 * H:4 * H]
    c_new = f * c + i * g
    h_new = o * jnp.tanh(c_new)
    return h_new, c_new


def dlstm_kernel(hc_ref, w_ref, b_ref, out_ref):
    # hc_ref : [1, 4, H]   rows (h0, c0, h1, c1) for this batch element
    # w_ref  : [4H, 4H]    row blocks: [out-fold w0x | w0_hh | w1_ih | w1_hh]
    # b_ref  : [8, 4H]     row 0: d0 bias, row 1: d0 bias + out-linear fold, row 2: d1 bias
    # out_ref: [1, S, H]   top-layer hidden per step (module's out_features)
    S = out_ref.shape[1]
    H = hc_ref.shape[2]

    w0x = w_ref[0 * H:1 * H, :]      # (out_w^T @ W0_ih^T) — folded `out` linear
    w0hh = w_ref[1 * H:2 * H, :]
    w1ih = w_ref[2 * H:3 * H, :]
    w1hh = w_ref[3 * H:4 * H, :]
    b0 = b_ref[0:1, :]
    b0p = b_ref[1:2, :]
    b1 = b_ref[2:3, :]

    hc = hc_ref[0]                   # [4, H]
    dh0, dc0 = hc[0:1, :], hc[1:2, :]
    dh1, dc1 = hc[2:3, :], hc[3:4, :]

    def dot(a, w):
        return jnp.dot(a, w, preferred_element_type=jnp.float32)

    outs = []

    # step 0 (peeled): decoder input x is all zeros -> only the recurrent half
    # of layer 0 plus its plain bias contributes.
    g0 = dot(dh0, w0hh) + b0
    dh0, dc0 = _lstm_gates(g0, dc0, H)
    g1 = dot(dh1, w1hh) + dot(dh0, w1ih) + b1   # carry-side half first
    dh1, dc1 = _lstm_gates(g1, dc1, H)
    outs.append(dh1)

    # steps 1..S-1, fully unrolled with static slices only.  Both halves of g0
    # depend only on the previous carry, so they issue in parallel; the
    # dh1 @ w1hh half of g1 also issues early, leaving only dh0_new @ w1ih on
    # the serial chain after layer-0's activations.
    for _ in range(1, S):
        g0 = dot(dh1, w0x) + dot(dh0, w0hh) + b0p
        dh0, dc0 = _lstm_gates(g0, dc0, H)
        g1 = dot(dh1, w1hh) + dot(dh0, w1ih) + b1
        dh1, dc1 = _lstm_gates(g1, dc1, H)
        outs.append(dh1)

    # one bulk store for the whole sequence instead of S masked row stores
    out_ref[0, :, :] = jnp.concatenate(outs, axis=0)


# ------------------------- parameter packing (hoisted) -------------------------

def pack_dlstm_params(p):
    """Fold the `out` linear into layer-0's next-step input projection and pack
    the 7 decoder parameter arrays into one weight blob + one bias blob.
    Call ONCE at parameter-creation time (not in the per-call path)."""
    H = p["d0_whh_t"].shape[0]
    G = 4 * H
    hi = jax.lax.Precision.HIGHEST
    w0x = jnp.dot(p["out_w_t"], p["d0_wih_t"], precision=hi)             # [H, 4H]
    b0p = p["d0_b"] + jnp.dot(p["out_b"], p["d0_wih_t"], precision=hi)   # [1, 4H]
    wblob = jnp.concatenate(
        [w0x, p["d0_whh_t"], p["d1_wih_t"], p["d1_whh_t"]], axis=0)      # [4H, 4H]
    bblob = jnp.concatenate(
        [p["d0_b"], b0p, p["d1_b"], jnp.zeros((5, G), jnp.float32)], axis=0)  # [8, 4H]
    return wblob.astype(jnp.float32), bblob.astype(jnp.float32)


# ------------------------------ forward wrapper -------------------------------

@functools.partial(jax.jit, static_argnames=("seq_len",))
def dlstm_forward(seq_len, init_h, init_c, wblob, bblob):
    """dLSTM.forward(seq_len, (h, c)).

    init_h, init_c: [num_layers=2, B, H].  Returns [seq_len, B, H] (the stacked
    out_features list of the PyTorch module)."""
    _, B, H = init_h.shape
    G = 4 * H
    # pack (h0, c0, h1, c1) per batch element -> [B, 4, H]
    hc = jnp.stack([init_h[0], init_c[0], init_h[1], init_c[1]], axis=1)
    hc = hc.astype(jnp.float32)

    out = pl.pallas_call(
        dlstm_kernel,
        out_shape=jax.ShapeDtypeStruct((B, seq_len, H), jnp.float32),
        grid=(B,),
        in_specs=[
            pl.BlockSpec((1, 4, H), lambda b: (b, 0, 0)),
            pl.BlockSpec((G, G), lambda b: (0, 0)),
            pl.BlockSpec((8, G), lambda b: (0, 0)),
        ],
        out_specs=pl.BlockSpec((1, seq_len, H), lambda b: (b, 0, 0)),
        compiler_params=pltpu.CompilerParams(
            dimension_semantics=("parallel",)),   # batch sequences across TCs
    )(hc, wblob, bblob)
    return jnp.transpose(out, (1, 0, 2))          # [S, B, H]


# --------------------------- parameter construction ---------------------------

def init_params(key, input_size, hidden_size):
    """Deterministic PyTorch-shaped init: uniform(-1/sqrt(H), 1/sqrt(H))."""
    D, H = input_size, hidden_size
    k = 1.0 / (H ** 0.5)

    def u(key, shape):
        return jax.random.uniform(key, shape, jnp.float32, minval=-k, maxval=k)

    keys = iter(jax.random.split(key, 16))
    p = {}

    def lstm_cell(prefix, in_dim):
        w_ih = u(next(keys), (4 * H, in_dim))
        w_hh = u(next(keys), (4 * H, H))
        b_ih = u(next(keys), (4 * H,))
        b_hh = u(next(keys), (4 * H,))
        p[prefix + "_wih_t"] = w_ih.T                       # [in, 4H]
        p[prefix + "_whh_t"] = w_hh.T                       # [H, 4H]
        p[prefix + "_b"] = (b_ih + b_hh).reshape(1, 4 * H)  # [1, 4H]

    # StackedLSTMCell(num_layers=2, input_size, hidden_size)
    lstm_cell("d0", D)   # layer 0: LSTMCell(input_size, hidden_size)
    lstm_cell("d1", H)   # layer 1: LSTMCell(hidden_size, hidden_size)
    # self.out = nn.Linear(hidden_size, input_size)
    p["out_w_t"] = u(next(keys), (D, H)).T                  # [H, D]
    p["out_b"] = u(next(keys), (D,)).reshape(1, D)
    return p


# ---------------------------- pure-JAX reference ------------------------------

def _ref_cell(x, h, c, w_ih_t, w_hh_t, b, H):
    gates = x @ w_ih_t + h @ w_hh_t + b
    i = jax.nn.sigmoid(gates[:, 0:H])
    f = jax.nn.sigmoid(gates[:, H:2 * H])
    g = jnp.tanh(gates[:, 2 * H:3 * H])
    o = jax.nn.sigmoid(gates[:, 3 * H:4 * H])
    c = f * c + i * g
    return o * jnp.tanh(c), c


def dlstm_ref(seq_len, init_h, init_c, p):
    _, B, H = init_h.shape
    x = jnp.zeros((B, H), jnp.float32)
    h0, c0 = init_h[0], init_c[0]
    h1, c1 = init_h[1], init_c[1]
    outs = []
    for _ in range(seq_len):
        h0, c0 = _ref_cell(x, h0, c0, p["d0_wih_t"], p["d0_whh_t"], p["d0_b"], H)
        h1, c1 = _ref_cell(h0, h1, c1, p["d1_wih_t"], p["d1_whh_t"], p["d1_b"], H)
        x = h1 @ p["out_w_t"] + p["out_b"]
        outs.append(h1)
    return jnp.stack(outs)   # [S, B, H]


if __name__ == "__main__":
    # input_size == hidden_size, as required by the module (x starts as
    # zeros(batch, hidden_size) feeding an LSTMCell that expects input_size).
    seq_len, input_size, hidden_size, batch = 8, 32, 32, 2

    root = jax.random.PRNGKey(0)
    k_h, k_c, k_p = jax.random.split(root, 3)
    init_h = jax.random.normal(k_h, (2, batch, hidden_size), jnp.float32)
    init_c = jax.random.normal(k_c, (2, batch, hidden_size), jnp.float32)
    params = init_params(k_p, input_size, hidden_size)

    # pack once at parameter-creation time (hoisted out of the per-call path)
    wblob, bblob = jax.block_until_ready(pack_dlstm_params(params))

    out = jax.block_until_ready(
        dlstm_forward(seq_len, init_h, init_c, wblob, bblob))

    ref = dlstm_ref(seq_len, init_h, init_c, params)
    assert out.shape == (seq_len, batch, hidden_size)
    assert jnp.allclose(out, ref, atol=1e-4, rtol=1e-4)

    print("KERNEL_OK")
</pallas_src>

<mosaic_0001>
module attributes {stable_mosaic.version = 11 : i64} {
  func.func @dlstm_kernel(%arg0: i32, %arg1: memref<1x4x32xf32, #tpu.memory_space<vmem>>, %arg2: memref<128x128xf32, #tpu.memory_space<vmem>>, %arg3: memref<8x128xf32, #tpu.memory_space<vmem>>, %arg4: memref<1x8x32xf32, #tpu.memory_space<vmem>>) attributes {dimension_semantics = [#tpu.dimension_semantics<parallel>], iteration_bounds = array<i64: 2>, scalar_prefetch = 0 : i64, scratch_operands = 0 : i64, tpu.core_type = #tpu.core_type<tc>, window_params = [{transform_indices = @transform_0, window_bounds = array<i64: 1, 4, 32>}, {pipeline_mode = #tpu.pipeline_mode<synchronous>, transform_indices = @transform_1, window_bounds = array<i64: 128, 128>}, {pipeline_mode = #tpu.pipeline_mode<synchronous>, transform_indices = @transform_2, window_bounds = array<i64: 8, 128>}, {transform_indices = @transform_3, window_bounds = array<i64: 1, 8, 32>}]} {
    %c0 = arith.constant 0 : index
    %c0_0 = arith.constant 0 : index
    %0 = vector.load %arg2[%c0, %c0_0] : memref<128x128xf32, #tpu.memory_space<vmem>>, vector<32x128xf32>
    %c32 = arith.constant 32 : index
    %c0_1 = arith.constant 0 : index
    %1 = vector.load %arg2[%c32, %c0_1] : memref<128x128xf32, #tpu.memory_space<vmem>>, vector<32x128xf32>
    %c64 = arith.constant 64 : index
    %c0_2 = arith.constant 0 : index
    %2 = vector.load %arg2[%c64, %c0_2] : memref<128x128xf32, #tpu.memory_space<vmem>>, vector<32x128xf32>
    %c96 = arith.constant 96 : index
    %c0_3 = arith.constant 0 : index
    %3 = vector.load %arg2[%c96, %c0_3] : memref<128x128xf32, #tpu.memory_space<vmem>>, vector<32x128xf32>
    %c0_4 = arith.constant 0 : index
    %c0_5 = arith.constant 0 : index
    %4 = vector.load %arg3[%c0_4, %c0_5] : memref<8x128xf32, #tpu.memory_space<vmem>>, vector<1x128xf32>
    %c1 = arith.constant 1 : index
    %c0_6 = arith.constant 0 : index
    %5 = vector.load %arg3[%c1, %c0_6] : memref<8x128xf32, #tpu.memory_space<vmem>>, vector<1x128xf32>
    %c2 = arith.constant 2 : index
    %c0_7 = arith.constant 0 : index
    %6 = vector.load %arg3[%c2, %c0_7] : memref<8x128xf32, #tpu.memory_space<vmem>>, vector<1x128xf32>
    %c0_8 = arith.constant 0 : index
    %c0_9 = arith.constant 0 : index
    %c0_10 = arith.constant 0 : index
    %7 = vector.load %arg1[%c0_8, %c0_9, %c0_10] : memref<1x4x32xf32, #tpu.memory_space<vmem>>, vector<1x4x32xf32>
    %8 = vector.shape_cast %7 : vector<1x4x32xf32> to vector<4x32xf32>
    %9 = vector.extract_strided_slice %8 {offsets = [0, 0], sizes = [1, 32], strides = [1, 1]} : vector<4x32xf32> to vector<1x32xf32>
    %10 = vector.extract_strided_slice %8 {offsets = [1, 0], sizes = [1, 32], strides = [1, 1]} : vector<4x32xf32> to vector<1x32xf32>
    %11 = vector.extract_strided_slice %8 {offsets = [2, 0], sizes = [1, 32], strides = [1, 1]} : vector<4x32xf32> to vector<1x32xf32>
    %12 = vector.extract_strided_slice %8 {offsets = [3, 0], sizes = [1, 32], strides = [1, 1]} : vector<4x32xf32> to vector<1x32xf32>
    %cst = arith.constant dense<0.000000e+00> : vector<1x128xf32>
    %13 = tpu.matmul %9, %1, %cst {dimension_numbers = #tpu.dot_dimension_numbers<[1], [0], [0], [1], [0, 0, 1, 1], [], []>} : vector<1x32xf32>, vector<32x128xf32>, vector<1x128xf32> -> vector<1x128xf32>
    %14 = arith.addf %13, %4 : vector<1x128xf32>
    %15 = arith.negf %14 : vector<1x128xf32>
    %16 = math.exp %15 : vector<1x128xf32>
    %cst_11 = arith.constant 1.000000e+00 : f32
    %17 = vector.broadcast %cst_11 : f32 to vector<1x128xf32>
    %18 = arith.addf %17, %16 : vector<1x128xf32>
    %19 = arith.divf %17, %18 : vector<1x128xf32>
    %20 = math.tanh %14 : vector<1x128xf32>
    %21 = vector.extract_strided_slice %19 {offsets = [0, 0], sizes = [1, 32], strides = [1, 1]} : vector<1x128xf32> to vector<1x32xf32>
    %22 = vector.extract_strided_slice %19 {offsets = [0, 32], sizes = [1, 32], strides = [1, 1]} : vector<1x128xf32> to vector<1x32xf32>
    %23 = vector.extract_strided_slice %20 {offsets = [0, 64], sizes = [1, 32], strides = [1, 1]} : vector<1x128xf32> to vector<1x32xf32>
    %24 = vector.extract_strided_slice %19 {offsets = [0, 96], sizes = [1, 32], strides = [1, 1]} : vector<1x128xf32> to vector<1x32xf32>
    %25 = arith.mulf %22, %10 : vector<1x32xf32>
    %26 = arith.mulf %21, %23 : vector<1x32xf32>
    %27 = arith.addf %25, %26 : vector<1x32xf32>
    %28 = math.tanh %27 : vector<1x32xf32>
    %29 = arith.mulf %24, %28 : vector<1x32xf32>
    %cst_12 = arith.constant dense<0.000000e+00> : vector<1x128xf32>
    %30 = tpu.matmul %11, %3, %cst_12 {dimension_numbers = #tpu.dot_dimension_numbers<[1], [0], [0], [1], [0, 0, 1, 1], [], []>} : vector<1x32xf32>, vector<32x128xf32>, vector<1x128xf32> -> vector<1x128xf32>
    %cst_13 = arith.constant dense<0.000000e+00> : vector<1x128xf32>
    %31 = tpu.matmul %29, %2, %cst_13 {dimension_numbers = #tpu.dot_dimension_numbers<[1], [0], [0], [1], [0, 0, 1, 1], [], []>} : vector<1x32xf32>, vector<32x128xf32>, vector<1x128xf32> -> vector<1x128xf32>
    %32 = arith.addf %30, %31 : vector<1x128xf32>
    %33 = arith.addf %32, %6 : vector<1x128xf32>
    %34 = arith.negf %33 : vector<1x128xf32>
    %35 = math.exp %34 : vector<1x128xf32>
    %cst_14 = arith.constant 1.000000e+00 : f32
    %36 = vector.broadcast %cst_14 : f32 to vector<1x128xf32>
    %37 = arith.addf %36, %35 : vector<1x128xf32>
    %38 = arith.divf %36, %37 : vector<1x128xf32>
    %39 = math.tanh %33 : vector<1x128xf32>
    %40 = vector.extract_strided_slice %38 {offsets = [0, 0], sizes = [1, 32], strides = [1, 1]} : vector<1x128xf32> to vector<1x32xf32>
    %41 = vector.extract_strided_slice %38 {offsets = [0, 32], sizes = [1, 32], strides = [1, 1]} : vector<1x128xf32> to vector<1x32xf32>
    %42 = vector.extract_strided_slice %39 {offsets = [0, 64], sizes = [1, 32], strides = [1, 1]} : vector<1x128xf32> to vector<1x32xf32>
    %43 = vector.extract_strided_slice %38 {offsets = [0, 96], sizes = [1, 32], strides = [1, 1]} : vector<1x128xf32> to vector<1x32xf32>
    %44 = arith.mulf %41, %12 : vector<1x32xf32>
    %45 = arith.mulf %40, %42 : vector<1x32xf32>
    %46 = arith.addf %44, %45 : vector<1x32xf32>
    %47 = math.tanh %46 : vector<1x32xf32>
    %48 = arith.mulf %43, %47 : vector<1x32xf32>
    %cst_15 = arith.constant dense<0.000000e+00> : vector<1x128xf32>
    %49 = tpu.matmul %48, %0, %cst_15 {dimension_numbers = #tpu.dot_dimension_numbers<[1], [0], [0], [1], [0, 0, 1, 1], [], []>} : vector<1x32xf32>, vector<32x128xf32>, vector<1x128xf32> -> vector<1x128xf32>
    %cst_16 = arith.constant dense<0.000000e+00> : vector<1x128xf32>
    %50 = tpu.matmul %29, %1, %cst_16 {dimension_numbers = #tpu.dot_dimension_numbers<[1], [0], [0], [1], [0, 0, 1, 1], [], []>} : vector<1x32xf32>, vector<32x128xf32>, vector<1x128xf32> -> vector<1x128xf32>
    %51 = arith.addf %49, %50 : vector<1x128xf32>
    %52 = arith.addf %51, %5 : vector<1x128xf32>
    %53 = arith.negf %52 : vector<1x128xf32>
    %54 = math.exp %53 : vector<1x128xf32>
    %cst_17 = arith.constant 1.000000e+00 : f32
    %55 = vector.broadcast %cst_17 : f32 to vector<1x128xf32>
    %56 = arith.addf %55, %54 : vector<1x128xf32>
    %57 = arith.divf %55, %56 : vector<1x128xf32>
    %58 = math.tanh %52 : vector<1x128xf32>
    %59 = vector.extract_strided_slice %57 {offsets = [0, 0], sizes = [1, 32], strides = [1, 1]} : vector<1x128xf32> to vector<1x32xf32>
    %60 = vector.extract_strided_slice %57 {offsets = [0, 32], sizes = [1, 32], strides = [1, 1]} : vector<1x128xf32> to vector<1x32xf32>
    %61 = vector.extract_strided_slice %58 {offsets = [0, 64], sizes = [1, 32], strides = [1, 1]} : vector<1x128xf32> to vector<1x32xf32>
    %62 = vector.extract_strided_slice %57 {offsets = [0, 96], sizes = [1, 32], strides = [1, 1]} : vector<1x128xf32> to vector<1x32xf32>
    %63 = arith.mulf %60, %27 : vector<1x32xf32>
    %64 = arith.mulf %59, %61 : vector<1x32xf32>
    %65 = arith.addf %63, %64 : vector<1x32xf32>
    %66 = math.tanh %65 : vector<1x32xf32>
    %67 = arith.mulf %62, %66 : vector<1x32xf32>
    %cst_18 = arith.constant dense<0.000000e+00> : vector<1x128xf32>
    %68 = tpu.matmul %48, %3, %cst_18 {dimension_numbers = #tpu.dot_dimension_numbers<[1], [0], [0], [1], [0, 0, 1, 1], [], []>} : vector<1x32xf32>, vector<32x128xf32>, vector<1x128xf32> -> vector<1x128xf32>
    %cst_19 = arith.constant dense<0.000000e+00> : vector<1x128xf32>
    %69 = tpu.matmul %67, %2, %cst_19 {dimension_numbers = #tpu.dot_dimension_numbers<[1], [0], [0], [1], [0, 0, 1, 1], [], []>} : vector<1x32xf32>, vector<32x128xf32>, vector<1x128xf32> -> vector<1x128xf32>
    %70 = arith.addf %68, %69 : vector<1x128xf32>
    %71 = arith.addf %70, %6 : vector<1x128xf32>
    %72 = arith.negf %71 : vector<1x128xf32>
    %73 = math.exp %72 : vector<1x128xf32>
    %cst_20 = arith.constant 1.000000e+00 : f32
    %74 = vector.broadcast %cst_20 : f32 to vector<1x128xf32>
    %75 = arith.addf %74, %73 : vector<1x128xf32>
    %76 = arith.divf %74, %75 : vector<1x128xf32>
    %77 = math.tanh %71 : vector<1x128xf32>
    %78 = vector.extract_strided_slice %76 {offsets = [0, 0], sizes = [1, 32], strides = [1, 1]} : vector<1x128xf32> to vector<1x32xf32>
    %79 = vector.extract_strided_slice %76 {offsets = [0, 32], sizes = [1, 32], strides = [1, 1]} : vector<1x128xf32> to vector<1x32xf32>
    %80 = vector.extract_strided_slice %77 {offsets = [0, 64], sizes = [1, 32], strides = [1, 1]} : vector<1x128xf32> to vector<1x32xf32>
    %81 = vector.extract_strided_slice %76 {offsets = [0, 96], sizes = [1, 32], strides = [1, 1]} : vector<1x128xf32> to vector<1x32xf32>
    %82 = arith.mulf %79, %46 : vector<1x32xf32>
    %83 = arith.mulf %78, %80 : vector<1x32xf32>
    %84 = arith.addf %82, %83 : vector<1x32xf32>
    %85 = math.tanh %84 : vector<1x32xf32>
    %86 = arith.mulf %81, %85 : vector<1x32xf32>
    %cst_21 = arith.constant dense<0.000000e+00> : vector<1x128xf32>
    %87 = tpu.matmul %86, %0, %cst_21 {dimension_numbers = #tpu.dot_dimension_numbers<[1], [0], [0], [1], [0, 0, 1, 1], [], []>} : vector<1x32xf32>, vector<32x128xf32>, vector<1x128xf32> -> vector<1x128xf32>
    %cst_22 = arith.constant dense<0.000000e+00> : vector<1x128xf32>
    %88 = tpu.matmul %67, %1, %cst_22 {dimension_numbers = #tpu.dot_dimension_numbers<[1], [0], [0], [1], [0, 0, 1, 1], [], []>} : vector<1x32xf32>, vector<32x128xf32>, vector<1x128xf32> -> vector<1x128xf32>
    %89 = arith.addf %87, %88 : vector<1x128xf32>
    %90 = arith.addf %89, %5 : vector<1x128xf32>
    %91 = arith.negf %90 : vector<1x128xf32>
    %92 = math.exp %91 : vector<1x128xf32>
    %cst_23 = arith.constant 1.000000e+00 : f32
    %93 = vector.broadcast %cst_23 : f32 to vector<1x128xf32>
    %94 = arith.addf %93, %92 : vector<1x128xf32>
    %95 = arith.divf %93, %94 : vector<1x128xf32>
    %96 = math.tanh %90 : vector<1x128xf32>
    %97 = vector.extract_strided_slice %95 {offsets = [0, 0], sizes = [1, 32], strides = [1, 1]} : vector<1x128xf32> to vector<1x32xf32>
    %98 = vector.extract_strided_slice %95 {offsets = [0, 32], sizes = [1, 32], strides = [1, 1]} : vector<1x128xf32> to vector<1x32xf32>
    %99 = vector.extract_strided_slice %96 {offsets = [0, 64], sizes = [1, 32], strides = [1, 1]} : vector<1x128xf32> to vector<1x32xf32>
    %100 = vector.extract_strided_slice %95 {offsets = [0, 96], sizes = [1, 32], strides = [1, 1]} : vector<1x128xf32> to vector<1x32xf32>
    %101 = arith.mulf %98, %65 : vector<1x32xf32>
    %102 = arith.mulf %97, %99 : vector<1x32xf32>
    %103 = arith.addf %101, %102 : vector<1x32xf32>
    %104 = math.tanh %103 : vector<1x32xf32>
    %105 = arith.mulf %100, %104 : vector<1x32xf32>
    %cst_24 = arith.constant dense<0.000000e+00> : vector<1x128xf32>
    %106 = tpu.matmul %86, %3, %cst_24 {dimension_numbers = #tpu.dot_dimension_numbers<[1], [0], [0], [1], [0, 0, 1, 1], [], []>} : vector<1x32xf32>, vector<32x128xf32>, vector<1x128xf32> -> vector<1x128xf32>
    %cst_25 = arith.constant dense<0.000000e+00> : vector<1x128xf32>
    %107 = tpu.matmul %105, %2, %cst_25 {dimension_numbers = #tpu.dot_dimension_numbers<[1], [0], [0], [1], [0, 0, 1, 1], [], []>} : vector<1x32xf32>, vector<32x128xf32>, vector<1x128xf32> -> vector<1x128xf32>
    %108 = arith.addf %106, %107 : vector<1x128xf32>
    %109 = arith.addf %108, %6 : vector<1x128xf32>
    %110 = arith.negf %109 : vector<1x128xf32>
    %111 = math.exp %110 : vector<1x128xf32>
    %cst_26 = arith.constant 1.000000e+00 : f32
    %112 = vector.broadcast %cst_26 : f32 to vector<1x128xf32>
    %113 = arith.addf %112, %111 : vector<1x128xf32>
    %114 = arith.divf %112, %113 : vector<1x128xf32>
    %115 = math.tanh %109 : vector<1x128xf32>
    %116 = vector.extract_strided_slice %114 {offsets = [0, 0], sizes = [1, 32], strides = [1, 1]} : vector<1x128xf32> to vector<1x32xf32>
    %117 = vector.extract_strided_slice %114 {offsets = [0, 32], sizes = [1, 32], strides = [1, 1]} : vector<1x128xf32> to vector<1x32xf32>
    %118 = vector.extract_strided_slice %115 {offsets = [0, 64], sizes = [1, 32], strides = [1, 1]} : vector<1x128xf32> to vector<1x32xf32>
    %119 = vector.extract_strided_slice %114 {offsets = [0, 96], sizes = [1, 32], strides = [1, 1]} : vector<1x128xf32> to vector<1x32xf32>
    %120 = arith.mulf %117, %84 : vector<1x32xf32>
    %121 = arith.mulf %116, %118 : vector<1x32xf32>
    %122 = arith.addf %120, %121 : vector<1x32xf32>
    %123 = math.tanh %122 : vector<1x32xf32>
    %124 = arith.mulf %119, %123 : vector<1x32xf32>
    %cst_27 = arith.constant dense<0.000000e+00> : vector<1x128xf32>
    %125 = tpu.matmul %124, %0, %cst_27 {dimension_numbers = #tpu.dot_dimension_numbers<[1], [0], [0], [1], [0, 0, 1, 1], [], []>} : vector<1x32xf32>, vector<32x128xf32>, vector<1x128xf32> -> vector<1x128xf32>
    %cst_28 = arith.constant dense<0.000000e+00> : vector<1x128xf32>
    %126 = tpu.matmul %105, %1, %cst_28 {dimension_numbers = #tpu.dot_dimension_numbers<[1], [0], [0], [1], [0, 0, 1, 1], [], []>} : vector<1x32xf32>, vector<32x128xf32>, vector<1x128xf32> -> vector<1x128xf32>
    %127 = arith.addf %125, %126 : vector<1x128xf32>
    %128 = arith.addf %127, %5 : vector<1x128xf32>
    %129 = arith.negf %128 : vector<1x128xf32>
    %130 = math.exp %129 : vector<1x128xf32>
    %cst_29 = arith.constant 1.000000e+00 : f32
    %131 = vector.broadcast %cst_29 : f32 to vector<1x128xf32>
    %132 = arith.addf %131, %130 : vector<1x128xf32>
    %133 = arith.divf %131, %132 : vector<1x128xf32>
    %134 = math.tanh %128 : vector<1x128xf32>
    %135 = vector.extract_strided_slice %133 {offsets = [0, 0], sizes = [1, 32], strides = [1, 1]} : vector<1x128xf32> to vector<1x32xf32>
    %136 = vector.extract_strided_slice %133 {offsets = [0, 32], sizes = [1, 32], strides = [1, 1]} : vector<1x128xf32> to vector<1x32xf32>
    %137 = vector.extract_strided_slice %134 {offsets = [0, 64], sizes = [1, 32], strides = [1, 1]} : vector<1x128xf32> to vector<1x32xf32>
    %138 = vector.extract_strided_slice %133 {offsets = [0, 96], sizes = [1, 32], strides = [1, 1]} : vector<1x128xf32> to vector<1x32xf32>
    %139 = arith.mulf %136, %103 : vector<1x32xf32>
    %140 = arith.mulf %135, %137 : vector<1x32xf32>
    %141 = arith.addf %139, %140 : vector<1x32xf32>
    %142 = math.tanh %141 : vector<1x32xf32>
    %143 = arith.mulf %138, %142 : vector<1x32xf32>
    %cst_30 = arith.constant dense<0.000000e+00> : vector<1x128xf32>
    %144 = tpu.matmul %124, %3, %cst_30 {dimension_numbers = #tpu.dot_dimension_numbers<[1], [0], [0], [1], [0, 0, 1, 1], [], []>} : vector<1x32xf32>, vector<32x128xf32>, vector<1x128xf32> -> vector<1x128xf32>
    %cst_31 = arith.constant dense<0.000000e+00> : vector<1x128xf32>
    %145 = tpu.matmul %143, %2, %cst_31 {dimension_numbers = #tpu.dot_dimension_numbers<[1], [0], [0], [1], [0, 0, 1, 1], [], []>} : vector<1x32xf32>, vector<32x128xf32>, vector<1x128xf32> -> vector<1x128xf32>
    %146 = arith.addf %144, %145 : vector<1x128xf32>
    %147 = arith.addf %146, %6 : vector<1x128xf32>
    %148 = arith.negf %147 : vector<1x128xf32>
    %149 = math.exp %148 : vector<1x128xf32>
    %cst_32 = arith.constant 1.000000e+00 : f32
    %150 = vector.broadcast %cst_32 : f32 to vector<1x128xf32>
    %151 = arith.addf %150, %149 : vector<1x128xf32>
    %152 = arith.divf %150, %151 : vector<1x128xf32>
    %153 = math.tanh %147 : vector<1x128xf32>
    %154 = vector.extract_strided_slice %152 {offsets = [0, 0], sizes = [1, 32], strides = [1, 1]} : vector<1x128xf32> to vector<1x32xf32>
    %155 = vector.extract_strided_slice %152 {offsets = [0, 32], sizes = [1, 32], strides = [1, 1]} : vector<1x128xf32> to vector<1x32xf32>
    %156 = vector.extract_strided_slice %153 {offsets = [0, 64], sizes = [1, 32], strides = [1, 1]} : vector<1x128xf32> to vector<1x32xf32>
    %157 = vector.extract_strided_slice %152 {offsets = [0, 96], sizes = [1, 32], strides = [1, 1]} : vector<1x128xf32> to vector<1x32xf32>
    %158 = arith.mulf %155, %122 : vector<1x32xf32>
    %159 = arith.mulf %154, %156 : vector<1x32xf32>
    %160 = arith.addf %158, %159 : vector<1x32xf32>
    %161 = math.tanh %160 : vector<1x32xf32>
    %162 = arith.mulf %157, %161 : vector<1x32xf32>
    %cst_33 = arith.constant dense<0.000000e+00> : vector<1x128xf32>
    %163 = tpu.matmul %162, %0, %cst_33 {dimension_numbers = #tpu.dot_dimension_numbers<[1], [0], [0], [1], [0, 0, 1, 1], [], []>} : vector<1x32xf32>, vector<32x128xf32>, vector<1x128xf32> -> vector<1x128xf32>
    %cst_34 = arith.constant dense<0.000000e+00> : vector<1x128xf32>
    %164 = tpu.matmul %143, %1, %cst_34 {dimension_numbers = #tpu.dot_dimension_numbers<[1], [0], [0], [1], [0, 0, 1, 1], [], []>} : vector<1x32xf32>, vector<32x128xf32>, vector<1x128xf32> -> vector<1x128xf32>
    %165 = arith.addf %163, %164 : vector<1x128xf32>
    %166 = arith.addf %165, %5 : vector<1x128xf32>
    %167 = arith.negf %166 : vector<1x128xf32>
    %168 = math.exp %167 : vector<1x128xf32>
    %cst_35 = arith.constant 1.000000e+00 : f32
    %169 = vector.broadcast %cst_35 : f32 to vector<1x128xf32>
    %170 = arith.addf %169, %168 : vector<1x128xf32>
    %171 = arith.divf %169, %170 : vector<1x128xf32>
    %172 = math.tanh %166 : vector<1x128xf32>
    %173 = vector.extract_strided_slice %171 {offsets = [0, 0], sizes = [1, 32], strides = [1, 1]} : vector<1x128xf32> to vector<1x32xf32>
    %174 = vector.extract_strided_slice %171 {offsets = [0, 32], sizes = [1, 32], strides = [1, 1]} : vector<1x128xf32> to vector<1x32xf32>
    %175 = vector.extract_strided_slice %172 {offsets = [0, 64], sizes = [1, 32], strides = [1, 1]} : vector<1x128xf32> to vector<1x32xf32>
    %176 = vector.extract_strided_slice %171 {offsets = [0, 96], sizes = [1, 32], strides = [1, 1]} : vector<1x128xf32> to vector<1x32xf32>
    %177 = arith.mulf %174, %141 : vector<1x32xf32>
    %178 = arith.mulf %173, %175 : vector<1x32xf32>
    %179 = arith.addf %177, %178 : vector<1x32xf32>
    %180 = math.tanh %179 : vector<1x32xf32>
    %181 = arith.mulf %176, %180 : vector<1x32xf32>
    %cst_36 = arith.constant dense<0.000000e+00> : vector<1x128xf32>
    %182 = tpu.matmul %162, %3, %cst_36 {dimension_numbers = #tpu.dot_dimension_numbers<[1], [0], [0], [1], [0, 0, 1, 1], [], []>} : vector<1x32xf32>, vector<32x128xf32>, vector<1x128xf32> -> vector<1x128xf32>
    %cst_37 = arith.constant dense<0.000000e+00> : vector<1x128xf32>
    %183 = tpu.matmul %181, %2, %cst_37 {dimension_numbers = #tpu.dot_dimension_numbers<[1], [0], [0], [1], [0, 0, 1, 1], [], []>} : vector<1x32xf32>, vector<32x128xf32>, vector<1x128xf32> -> vector<1x128xf32>
    %184 = arith.addf %182, %183 : vector<1x128xf32>
    %185 = arith.addf %184, %6 : vector<1x128xf32>
    %186 = arith.negf %185 : vector<1x128xf32>
    %187 = math.exp %186 : vector<1x128xf32>
    %cst_38 = arith.constant 1.000000e+00 : f32
    %188 = vector.broadcast %cst_38 : f32 to vector<1x128xf32>
    %189 = arith.addf %188, %187 : vector<1x128xf32>
    %190 = arith.divf %188, %189 : vector<1x128xf32>
    %191 = math.tanh %185 : vector<1x128xf32>
    %192 = vector.extract_strided_slice %190 {offsets = [0, 0], sizes = [1, 32], strides = [1, 1]} : vector<1x128xf32> to vector<1x32xf32>
    %193 = vector.extract_strided_slice %190 {offsets = [0, 32], sizes = [1, 32], strides = [1, 1]} : vector<1x128xf32> to vector<1x32xf32>
    %194 = vector.extract_strided_slice %191 {offsets = [0, 64], sizes = [1, 32], strides = [1, 1]} : vector<1x128xf32> to vector<1x32xf32>
    %195 = vector.extract_strided_slice %190 {offsets = [0, 96], sizes = [1, 32], strides = [1, 1]} : vector<1x128xf32> to vector<1x32xf32>
    %196 = arith.mulf %193, %160 : vector<1x32xf32>
    %197 = arith.mulf %192, %194 : vector<1x32xf32>
    %198 = arith.addf %196, %197 : vector<1x32xf32>
    %199 = math.tanh %198 : vector<1x32xf32>
    %200 = arith.mulf %195, %199 : vector<1x32xf32>
    %cst_39 = arith.constant dense<0.000000e+00> : vector<1x128xf32>
    %201 = tpu.matmul %200, %0, %cst_39 {dimension_numbers = #tpu.dot_dimension_numbers<[1], [0], [0], [1], [0, 0, 1, 1], [], []>} : vector<1x32xf32>, vector<32x128xf32>, vector<1x128xf32> -> vector<1x128xf32>
    %cst_40 = arith.constant dense<0.000000e+00> : vector<1x128xf32>
    %202 = tpu.matmul %181, %1, %cst_40 {dimension_numbers = #tpu.dot_dimension_numbers<[1], [0], [0], [1], [0, 0, 1, 1], [], []>} : vector<1x32xf32>, vector<32x128xf32>, vector<1x128xf32> -> vector<1x128xf32>
    %203 = arith.addf %201, %202 : vector<1x128xf32>
    %204 = arith.addf %203, %5 : vector<1x128xf32>
    %205 = arith.negf %204 : vector<1x128xf32>
    %206 = math.exp %205 : vector<1x128xf32>
    %cst_41 = arith.constant 1.000000e+00 : f32
    %207 = vector.broadcast %cst_41 : f32 to vector<1x128xf32>
    %208 = arith.addf %207, %206 : vector<1x128xf32>
    %209 = arith.divf %207, %208 : vector<1x128xf32>
    %210 = math.tanh %204 : vector<1x128xf32>
    %211 = vector.extract_strided_slice %209 {offsets = [0, 0], sizes = [1, 32], strides = [1, 1]} : vector<1x128xf32> to vector<1x32xf32>
    %212 = vector.extract_strided_slice %209 {offsets = [0, 32], sizes = [1, 32], strides = [1, 1]} : vector<1x128xf32> to vector<1x32xf32>
    %213 = vector.extract_strided_slice %210 {offsets = [0, 64], sizes = [1, 32], strides = [1, 1]} : vector<1x128xf32> to vector<1x32xf32>
    %214 = vector.extract_strided_slice %209 {offsets = [0, 96], sizes = [1, 32], strides = [1, 1]} : vector<1x128xf32> to vector<1x32xf32>
    %215 = arith.mulf %212, %179 : vector<1x32xf32>
    %216 = arith.mulf %211, %213 : vector<1x32xf32>
    %217 = arith.addf %215, %216 : vector<1x32xf32>
    %218 = math.tanh %217 : vector<1x32xf32>
    %219 = arith.mulf %214, %218 : vector<1x32xf32>
    %cst_42 = arith.constant dense<0.000000e+00> : vector<1x128xf32>
    %220 = tpu.matmul %200, %3, %cst_42 {dimension_numbers = #tpu.dot_dimension_numbers<[1], [0], [0], [1], [0, 0, 1, 1], [], []>} : vector<1x32xf32>, vector<32x128xf32>, vector<1x128xf32> -> vector<1x128xf32>
    %cst_43 = arith.constant dense<0.000000e+00> : vector<1x128xf32>
    %221 = tpu.matmul %219, %2, %cst_43 {dimension_numbers = #tpu.dot_dimension_numbers<[1], [0], [0], [1], [0, 0, 1, 1], [], []>} : vector<1x32xf32>, vector<32x128xf32>, vector<1x128xf32> -> vector<1x128xf32>
    %222 = arith.addf %220, %221 : vector<1x128xf32>
    %223 = arith.addf %222, %6 : vector<1x128xf32>
    %224 = arith.negf %223 : vector<1x128xf32>
    %225 = math.exp %224 : vector<1x128xf32>
    %cst_44 = arith.constant 1.000000e+00 : f32
    %226 = vector.broadcast %cst_44 : f32 to vector<1x128xf32>
    %227 = arith.addf %226, %225 : vector<1x128xf32>
    %228 = arith.divf %226, %227 : vector<1x128xf32>
    %229 = math.tanh %223 : vector<1x128xf32>
    %230 = vector.extract_strided_slice %228 {offsets = [0, 0], sizes = [1, 32], strides = [1, 1]} : vector<1x128xf32> to vector<1x32xf32>
    %231 = vector.extract_strided_slice %228 {offsets = [0, 32], sizes = [1, 32], strides = [1, 1]} : vector<1x128xf32> to vector<1x32xf32>
    %232 = vector.extract_strided_slice %229 {offsets = [0, 64], sizes = [1, 32], strides = [1, 1]} : vector<1x128xf32> to vector<1x32xf32>
    %233 = vector.extract_strided_slice %228 {offsets = [0, 96], sizes = [1, 32], strides = [1, 1]} : vector<1x128xf32> to vector<1x32xf32>
    %234 = arith.mulf %231, %198 : vector<1x32xf32>
    %235 = arith.mulf %230, %232 : vector<1x32xf32>
    %236 = arith.addf %234, %235 : vector<1x32xf32>
    %237 = math.tanh %236 : vector<1x32xf32>
    %238 = arith.mulf %233, %237 : vector<1x32xf32>
    %cst_45 = arith.constant dense<0.000000e+00> : vector<1x128xf32>
    %239 = tpu.matmul %238, %0, %cst_45 {dimension_numbers = #tpu.dot_dimension_numbers<[1], [0], [0], [1], [0, 0, 1, 1], [], []>} : vector<1x32xf32>, vector<32x128xf32>, vector<1x128xf32> -> vector<1x128xf32>
    %cst_46 = arith.constant dense<0.000000e+00> : vector<1x128xf32>
    %240 = tpu.matmul %219, %1, %cst_46 {dimension_numbers = #tpu.dot_dimension_numbers<[1], [0], [0], [1], [0, 0, 1, 1], [], []>} : vector<1x32xf32>, vector<32x128xf32>, vector<1x128xf32> -> vector<1x128xf32>
    %241 = arith.addf %239, %240 : vector<1x128xf32>
    %242 = arith.addf %241, %5 : vector<1x128xf32>
    %243 = arith.negf %242 : vector<1x128xf32>
    %244 = math.exp %243 : vector<1x128xf32>
    %cst_47 = arith.constant 1.000000e+00 : f32
    %245 = vector.broadcast %cst_47 : f32 to vector<1x128xf32>
    %246 = arith.addf %245, %244 : vector<1x128xf32>
    %247 = arith.divf %245, %246 : vector<1x128xf32>
    %248 = math.tanh %242 : vector<1x128xf32>
    %249 = vector.extract_strided_slice %247 {offsets = [0, 0], sizes = [1, 32], strides = [1, 1]} : vector<1x128xf32> to vector<1x32xf32>
    %250 = vector.extract_strided_slice %247 {offsets = [0, 32], sizes = [1, 32], strides = [1, 1]} : vector<1x128xf32> to vector<1x32xf32>
    %251 = vector.extract_strided_slice %248 {offsets = [0, 64], sizes = [1, 32], strides = [1, 1]} : vector<1x128xf32> to vector<1x32xf32>
    %252 = vector.extract_strided_slice %247 {offsets = [0, 96], sizes = [1, 32], strides = [1, 1]} : vector<1x128xf32> to vector<1x32xf32>
    %253 = arith.mulf %250, %217 : vector<1x32xf32>
    %254 = arith.mulf %249, %251 : vector<1x32xf32>
    %255 = arith.addf %253, %254 : vector<1x32xf32>
    %256 = math.tanh %255 : vector<1x32xf32>
    %257 = arith.mulf %252, %256 : vector<1x32xf32>
    %cst_48 = arith.constant dense<0.000000e+00> : vector<1x128xf32>
    %258 = tpu.matmul %238, %3, %cst_48 {dimension_numbers = #tpu.dot_dimension_numbers<[1], [0], [0], [1], [0, 0, 1, 1], [], []>} : vector<1x32xf32>, vector<32x128xf32>, vector<1x128xf32> -> vector<1x128xf32>
    %cst_49 = arith.constant dense<0.000000e+00> : vector<1x128xf32>
    %259 = tpu.matmul %257, %2, %cst_49 {dimension_numbers = #tpu.dot_dimension_numbers<[1], [0], [0], [1], [0, 0, 1, 1], [], []>} : vector<1x32xf32>, vector<32x128xf32>, vector<1x128xf32> -> vector<1x128xf32>
    %260 = arith.addf %258, %259 : vector<1x128xf32>
    %261 = arith.addf %260, %6 : vector<1x128xf32>
    %262 = arith.negf %261 : vector<1x128xf32>
    %263 = math.exp %262 : vector<1x128xf32>
    %cst_50 = arith.constant 1.000000e+00 : f32
    %264 = vector.broadcast %cst_50 : f32 to vector<1x128xf32>
    %265 = arith.addf %264, %263 : vector<1x128xf32>
    %266 = arith.divf %264, %265 : vector<1x128xf32>
    %267 = math.tanh %261 : vector<1x128xf32>
    %268 = vector.extract_strided_slice %266 {offsets = [0, 0], sizes = [1, 32], strides = [1, 1]} : vector<1x128xf32> to vector<1x32xf32>
    %269 = vector.extract_strided_slice %266 {offsets = [0, 32], sizes = [1, 32], strides = [1, 1]} : vector<1x128xf32> to vector<1x32xf32>
    %270 = vector.extract_strided_slice %267 {offsets = [0, 64], sizes = [1, 32], strides = [1, 1]} : vector<1x128xf32> to vector<1x32xf32>
    %271 = vector.extract_strided_slice %266 {offsets = [0, 96], sizes = [1, 32], strides = [1, 1]} : vector<1x128xf32> to vector<1x32xf32>
    %272 = arith.mulf %269, %236 : vector<1x32xf32>
    %273 = arith.mulf %268, %270 : vector<1x32xf32>
    %274 = arith.addf %272, %273 : vector<1x32xf32>
    %275 = math.tanh %274 : vector<1x32xf32>
    %276 = arith.mulf %271, %275 : vector<1x32xf32>
    %cst_51 = arith.constant dense<0.000000e+00> : vector<1x128xf32>
    %277 = tpu.matmul %276, %0, %cst_51 {dimension_numbers = #tpu.dot_dimension_numbers<[1], [0], [0], [1], [0, 0, 1, 1], [], []>} : vector<1x32xf32>, vector<32x128xf32>, vector<1x128xf32> -> vector<1x128xf32>
    %cst_52 = arith.constant dense<0.000000e+00> : vector<1x128xf32>
    %278 = tpu.matmul %257, %1, %cst_52 {dimension_numbers = #tpu.dot_dimension_numbers<[1], [0], [0], [1], [0, 0, 1, 1], [], []>} : vector<1x32xf32>, vector<32x128xf32>, vector<1x128xf32> -> vector<1x128xf32>
    %279 = arith.addf %277, %278 : vector<1x128xf32>
    %280 = arith.addf %279, %5 : vector<1x128xf32>
    %281 = arith.negf %280 : vector<1x128xf32>
    %282 = math.exp %281 : vector<1x128xf32>
    %cst_53 = arith.constant 1.000000e+00 : f32
    %283 = vector.broadcast %cst_53 : f32 to vector<1x128xf32>
    %284 = arith.addf %283, %282 : vector<1x128xf32>
    %285 = arith.divf %283, %284 : vector<1x128xf32>
    %286 = math.tanh %280 : vector<1x128xf32>
    %287 = vector.extract_strided_slice %285 {offsets = [0, 0], sizes = [1, 32], strides = [1, 1]} : vector<1x128xf32> to vector<1x32xf32>
    %288 = vector.extract_strided_slice %285 {offsets = [0, 32], sizes = [1, 32], strides = [1, 1]} : vector<1x128xf32> to vector<1x32xf32>
    %289 = vector.extract_strided_slice %286 {offsets = [0, 64], sizes = [1, 32], strides = [1, 1]} : vector<1x128xf32> to vector<1x32xf32>
    %290 = vector.extract_strided_slice %285 {offsets = [0, 96], sizes = [1, 32], strides = [1, 1]} : vector<1x128xf32> to vector<1x32xf32>
    %291 = arith.mulf %288, %255 : vector<1x32xf32>
    %292 = arith.mulf %287, %289 : vector<1x32xf32>
    %293 = arith.addf %291, %292 : vector<1x32xf32>
    %294 = math.tanh %293 : vector<1x32xf32>
    %295 = arith.mulf %290, %294 : vector<1x32xf32>
    %cst_54 = arith.constant dense<0.000000e+00> : vector<1x128xf32>
    %296 = tpu.matmul %276, %3, %cst_54 {dimension_numbers = #tpu.dot_dimension_numbers<[1], [0], [0], [1], [0, 0, 1, 1], [], []>} : vector<1x32xf32>, vector<32x128xf32>, vector<1x128xf32> -> vector<1x128xf32>
    %cst_55 = arith.constant dense<0.000000e+00> : vector<1x128xf32>
    %297 = tpu.matmul %295, %2, %cst_55 {dimension_numbers = #tpu.dot_dimension_numbers<[1], [0], [0], [1], [0, 0, 1, 1], [], []>} : vector<1x32xf32>, vector<32x128xf32>, vector<1x128xf32> -> vector<1x128xf32>
    %298 = arith.addf %296, %297 : vector<1x128xf32>
    %299 = arith.addf %298, %6 : vector<1x128xf32>
    %300 = arith.negf %299 : vector<1x128xf32>
    %301 = math.exp %300 : vector<1x128xf32>
    %cst_56 = arith.constant 1.000000e+00 : f32
    %302 = vector.broadcast %cst_56 : f32 to vector<1x128xf32>
    %303 = arith.addf %302, %301 : vector<1x128xf32>
    %304 = arith.divf %302, %303 : vector<1x128xf32>
    %305 = math.tanh %299 : vector<1x128xf32>
    %306 = vector.extract_strided_slice %304 {offsets = [0, 0], sizes = [1, 32], strides = [1, 1]} : vector<1x128xf32> to vector<1x32xf32>
    %307 = vector.extract_strided_slice %304 {offsets = [0, 32], sizes = [1, 32], strides = [1, 1]} : vector<1x128xf32> to vector<1x32xf32>
    %308 = vector.extract_strided_slice %305 {offsets = [0, 64], sizes = [1, 32], strides = [1, 1]} : vector<1x128xf32> to vector<1x32xf32>
    %309 = vector.extract_strided_slice %304 {offsets = [0, 96], sizes = [1, 32], strides = [1, 1]} : vector<1x128xf32> to vector<1x32xf32>
    %310 = arith.mulf %307, %274 : vector<1x32xf32>
    %311 = arith.mulf %306, %308 : vector<1x32xf32>
    %312 = arith.addf %310, %311 : vector<1x32xf32>
    %313 = math.tanh %312 : vector<1x32xf32>
    %314 = arith.mulf %309, %313 : vector<1x32xf32>
    %315 = tpu.concatenate %48, %86, %124, %162, %200, %238, %276, %314 in 0 : vector<1x32xf32>, vector<1x32xf32>, vector<1x32xf32>, vector<1x32xf32>, vector<1x32xf32>, vector<1x32xf32>, vector<1x32xf32>, vector<1x32xf32> -> vector<8x32xf32>
    %c0_57 = arith.constant 0 : index
    %c0_58 = arith.constant 0 : index
    %c0_59 = arith.constant 0 : index
    %316 = vector.load %arg4[%c0_57, %c0_58, %c0_59] : memref<1x8x32xf32, #tpu.memory_space<vmem>>, vector<1x8x32xf32>
    %317 = vector.shape_cast %316 : vector<1x8x32xf32> to vector<8x32xf32>
    %318 = vector.shape_cast %315 : vector<8x32xf32> to vector<1x8x32xf32>
    tpu.vector_store %arg4[%c0_57, %c0_58, %c0_59], %318 {strides = array<i32>} : memref<1x8x32xf32, #tpu.memory_space<vmem>>, vector<1x8x32xf32>,
    return
  }
  func.func @transform_0(%arg0: i32) -> (i32, i32, i32) {
    %c0_i32 = arith.constant 0 : i32
    %c0_i32_0 = arith.constant 0 : i32
    %c0_i32_1 = arith.constant 0 : i32
    return %arg0, %c0_i32, %c0_i32_0 : i32, i32, i32
  }
  func.func @transform_1(%arg0: i32) -> (i32, i32) {
    %c0_i32 = arith.constant 0 : i32
    %c0_i32_0 = arith.constant 0 : i32
    %c0_i32_1 = arith.constant 0 : i32
    return %c0_i32, %c0_i32_0 : i32, i32
  }
  func.func @transform_2(%arg0: i32) -> (i32, i32) {
    %c0_i32 = arith.constant 0 : i32
    %c0_i32_0 = arith.constant 0 : i32
    %c0_i32_1 = arith.constant 0 : i32
    return %c0_i32, %c0_i32_0 : i32, i32
  }
  func.func @transform_3(%arg0: i32) -> (i32, i32, i32) {
    %c0_i32 = arith.constant 0 : i32
    %c0_i32_0 = arith.constant 0 : i32
    %c0_i32_1 = arith.constant 0 : i32
    return %arg0, %c0_i32, %c0_i32_0 : i32, i32, i32
  }
}

</mosaic_0001>

<llo_original>
// kernel: dlstm_forward.1
$region0: #{dlstm_forward.1}
  #allocation0 [shape = 'u32[]', space=smem, size = 0x4, offset = 0x4, fixed_abs, tag = 'smem constant byte address 0x4 - core index']
  #allocation1 [shape = 'u32[72,128]{1,0:T(1,128)}', space=vmem, size = 0x9000, scoped, tag = 'internal scratch']
  %s0 = inlined_call_operand.vmem [shape: f32[2,4,32], index: 0, kind: input, shape index: {}]
  %s1 = inlined_call_operand.hbm [shape: f32[128,128], index: 1, kind: input, shape index: {}]
  %s2 = inlined_call_operand.vmem [shape: f32[8,128], index: 2, kind: input, shape index: {}]
  %s3 = inlined_call_operand.vmem [shape: f32[2,8,32], index: 3, kind: output, shape index: {}]
  %s4 = sld [smem:[#allocation0]]
  $region49: #{dlstm_forward.1} parent=0
    _
  %s6 = ssub.s32 1, %s4
  %s7 = scalar_select 0, %s6, %s4
  $region1: #{dlstm_forward.1} parent=0
    #allocation2 [shape = 'u8[65536]{0}', space=vmem, size = 0x10000, scoped, tag = 'input window, operand 1, single buffered']
    #allocation3 [shape = 's32[2]{0}', space=sflag, size = 0x8, scoped, tag = 'scoped memory for dlstm_forward.1']
    %8 = vsyncpa [#allocation3], 0
    loop: start=0, step=1, limit=4
    $region2: #{dlstm_forward.1} parent=1 // loop_pre_header
      _
    $region3: #{dlstm_forward.1} parent=1 // loop_header
      %s10 = sphi 0, %s14
      %p11 = scmp.ge.s32.totalorder %s10, 4
      %s20 = sphi 0, %s22
      %s23 = sphi 0, %s20
      %s24 = sphi 0, %s23
      %s40 = sphi 0, %s24
      %s44 = sphi 0, %s44
      %s46 = sphi 0, %s44
      %s47 = sphi 0, %s46
      %s61 = sphi 0, %s47
      %s65 = sphi 0, %s65
      %s67 = sphi 0, %s65
      %s68 = sphi 0, %s67
      %s82 = sphi 0, %s68
      %s88 = sphi 0, %s90
      %s91 = sphi 0, %s88
      %s92 = sphi 0, %s91
      %s108 = sphi 0, %s92
    $region4: #{dlstm_forward.1} parent=1 // loop_header_branch
      %13 = sbr.rel (%p11) target = $region8
    $region5: #{dlstm_forward.1} parent=1 // loop_body
      %s15 = ssub.s32 %s10, 1
      %s16 = ssub.s32 %s10, 2
      %s17 = sadd.s32 %s10, 1
      %s18 = ssub.s32 %s10, %s17
      %p19 = scmp.eq.s32.totalorder %s18, 0
      %s21 = sadd.s32 %s20, 1
      %s22 = scalar_select %p19, %s20, %s21
      %p25 = pneg %p19
      %p26 = scmp.eq.s32.totalorder %s10, 1
      %p27 = por %p25, %p26
      %p28 = scmp.ne.s32.totalorder %s20, %s23
      %p29 = scmp.eq.s32.totalorder %s10, 0
      %p30 = por %p28, %p29
      %p31 = scmp.ne.s32.totalorder %s20, %s23
      %p32 = scmp.eq.s32.totalorder %s15, 1
      %p33 = por %p31, %p32
      %p34 = scmp.ne.s32.totalorder %s23, %s24
      %p35 = scmp.eq.s32.totalorder %s15, 0
      %p36 = por %p34, %p35
      %p37 = scmp.ne.s32.totalorder %s23, %s24
      %p38 = scmp.eq.s32.totalorder %s16, 1
      %p39 = por %p37, %p38
      %p41 = scmp.ne.s32.totalorder %s24, %s40
      %p42 = scmp.eq.s32.totalorder %s16, 0
      %p43 = por %p41, %p42
      %s45 = sadd.s32 %s44, 1
      %p48 = scmp.eq.s32.totalorder %s10, 1
      %p49 = scmp.ne.s32.totalorder %s44, %s46
      %p50 = scmp.eq.s32.totalorder %s10, 0
      %p51 = por %p49, %p50
      %p52 = scmp.ne.s32.totalorder %s44, %s46
      %p53 = scmp.eq.s32.totalorder %s15, 1
      %p54 = por %p52, %p53
      %p55 = scmp.ne.s32.totalorder %s46, %s47
      %p56 = scmp.eq.s32.totalorder %s15, 0
      %p57 = por %p55, %p56
      %p58 = scmp.ne.s32.totalorder %s46, %s47
      %p59 = scmp.eq.s32.totalorder %s16, 1
      %p60 = por %p58, %p59
      %p62 = scmp.ne.s32.totalorder %s47, %s61
      %p63 = scmp.eq.s32.totalorder %s16, 0
      %p64 = por %p62, %p63
      %s66 = sadd.s32 %s65, 1
      %p69 = scmp.eq.s32.totalorder %s10, 1
      %p70 = scmp.ne.s32.totalorder %s65, %s67
      %p71 = scmp.eq.s32.totalorder %s10, 0
      %p72 = por %p70, %p71
      %p73 = scmp.ne.s32.totalorder %s65, %s67
      %p74 = scmp.eq.s32.totalorder %s15, 1
      %p75 = por %p73, %p74
      %p76 = scmp.ne.s32.totalorder %s67, %s68
      %p77 = scmp.eq.s32.totalorder %s15, 0
      %p78 = por %p76, %p77
      %p79 = scmp.ne.s32.totalorder %s67, %s68
      %p80 = scmp.eq.s32.totalorder %s16, 1
      %p81 = por %p79, %p80
      %p83 = scmp.ne.s32.totalorder %s68, %s82
      %p84 = scmp.eq.s32.totalorder %s16, 0
      %p85 = por %p83, %p84
      %s86 = ssub.s32 %s10, %s17
      %p87 = scmp.eq.s32.totalorder %s86, 0
      %s89 = sadd.s32 %s88, 1
      %s90 = scalar_select %p87, %s88, %s89
      %p93 = pneg %p87
      %p94 = scmp.eq.s32.totalorder %s10, 1
      %p95 = por %p93, %p94
      %p96 = scmp.ne.s32.totalorder %s88, %s91
      %p97 = scmp.eq.s32.totalorder %s10, 0
      %p98 = por %p96, %p97
      %p99 = scmp.ne.s32.totalorder %s88, %s91
      %p100 = scmp.eq.s32.totalorder %s15, 1
      %p101 = por %p99, %p100
      %p102 = scmp.ne.s32.totalorder %s91, %s92
      %p103 = scmp.eq.s32.totalorder %s15, 0
      %p104 = por %p102, %p103
      %p105 = scmp.ne.s32.totalorder %s91, %s92
      %p106 = scmp.eq.s32.totalorder %s16, 1
      %p107 = por %p105, %p106
      %p109 = scmp.ne.s32.totalorder %s92, %s108
      %p110 = scmp.eq.s32.totalorder %s16, 0
      %p111 = por %p109, %p110
      %p112 = scmp.le.s32.totalorder 1, %s10
      %p113 = scmp.lt.s32.totalorder %s10, 3
      %p114 = pnand %p112, %p113
      %p115 = pneg %p114
      // Predicated region
      $region9: #{dlstm_forward.1} parent=5 // pred_check
        _
      $region10: #{dlstm_forward.1} parent=5 // pred_check_branch
        %117 = sbr.rel (%p114) target = $region12
      $region11: #{dlstm_forward.1} parent=5 // pred_region
        %s118 = ssub.s32 %s10, 1
        // Predicated region
        $region13: #{dlstm_forward.1} parent=11 // pred_check
          %p119 = pneg %p57
        $region14: #{dlstm_forward.1} parent=11 // pred_check_branch
          %121 = sbr.rel (%p119) target = $region16
        $region15: #{dlstm_forward.1} parent=11 // pred_region
          %123 = vsyncadd [#allocation3], 0
          %s124 = sshll.u32 %s1, 4
          %s125 = int_to_ptr.hbm [resolvable:$true] %s124
          %s126 = sshll.u32 [#allocation2], 4
          %s127 = int_to_ptr.vmem [resolvable:$true] %s126
          %132 = dma.hbm_to_vmem [thread:$0]  %s125, 2048, %s127, [#allocation3], 128, 128, 8
        $region16: #{dlstm_forward.1} parent=11 // pred_fallthru
          _
        // Predicated region
        $region17: #{dlstm_forward.1} parent=11 // pred_check
          %p133 = pneg %p78
        $region18: #{dlstm_forward.1} parent=11 // pred_check_branch
          %135 = sbr.rel (%p133) target = $region20
        $region19: #{dlstm_forward.1} parent=11 // pred_region
          _
        $region20: #{dlstm_forward.1} parent=11 // pred_fallthru
          _
      $region12: #{dlstm_forward.1} parent=5 // pred_fallthru
        _
      %p136 = scmp.lt.s32.totalorder %s10, 2
      // Predicated region
      $region21: #{dlstm_forward.1} parent=5 // pred_check
        %p137 = pneg %p136
      $region22: #{dlstm_forward.1} parent=5 // pred_check_branch
        %139 = sbr.rel (%p137) target = $region24
      $region23: #{dlstm_forward.1} parent=5 // pred_region
        // Predicated region
        $region25: #{dlstm_forward.1} parent=23 // pred_check
          %p140 = pneg %p30
        $region26: #{dlstm_forward.1} parent=23 // pred_check_branch
          %142 = sbr.rel (%p140) target = $region28
        $region27: #{dlstm_forward.1} parent=23 // pred_region
          %p143 = scmp.lt.s32.totalorder %s10, 1
          %s144 = scalar_select %p143, %s10, 1
          %s145 = smul.addr %s144, 4
          %s146 = scalar_lea.vmem %s0, %s145
        $region28: #{dlstm_forward.1} parent=23 // pred_fallthru
          _
      $region24: #{dlstm_forward.1} parent=5 // pred_fallthru
        _
      %p147 = scmp.le.s32.totalorder 1, %s10
      %p148 = scmp.lt.s32.totalorder %s10, 3
      %p149 = pnand %p147, %p148
      %p150 = pneg %p149
      // Predicated region
      $region29: #{dlstm_forward.1} parent=5 // pred_check
        _
      $region30: #{dlstm_forward.1} parent=5 // pred_check_branch
        %152 = sbr.rel (%p149) target = $region32
      $region31: #{dlstm_forward.1} parent=5 // pred_region
        %s153 = ssub.s32 %s10, 1
        // Predicated region
        $region33: #{dlstm_forward.1} parent=31 // pred_check
          %p154 = pneg %p57
        $region34: #{dlstm_forward.1} parent=31 // pred_check_branch
          %156 = sbr.rel (%p154) target = $region36
        $region35: #{dlstm_forward.1} parent=31 // pred_region
          %158 = dma.done [#allocation3], 2048
        $region36: #{dlstm_forward.1} parent=31 // pred_fallthru
          _
        %p159 = scmp.lt.s32.totalorder %s15, 1
        %s160 = scalar_select %p159, %s15, 1
        %s161 = smul.addr %s160, 4
        %s162 = scalar_lea.vmem %s0, %s161
        %p163 = pneg %p36
        %p164 = pneg %p33
        %p165 = pneg %p57
        %p166 = pneg %p54
        %p167 = pneg %p78
        %p168 = pneg %p75
        %p169 = pneg %p104
        %p170 = pneg %p101
        %p171 = scmp.lt.s32.totalorder %s15, 1
        %s172 = scalar_select %p171, %s15, 1
        %s173 = smul.addr %s172, 8
        %s174 = scalar_lea.vmem %s3, %s173
        %p175 = scmp.lt.s32.totalorder %s15, 1
        %s176 = scalar_select %p175, %s15, 1
        %s177 = smul.addr %s176, 4
        %s178 = scalar_lea.vmem %s0, %s177
        %p179 = scmp.lt.s32.totalorder %s15, 1
        %s180 = scalar_select %p179, %s15, 1
        %s181 = smul.addr %s180, 8
        %s182 = scalar_lea.vmem %s3, %s181
        %v183 = vld [vmem:[#allocation2] sm:$0xff]
        %v184 = vld [vmem:[#allocation2 + $0x8] sm:$0xff]
        %v185 = vld [vmem:[#allocation2 + $0x10] sm:$0xff]
        %v186 = vld [vmem:[#allocation2 + $0x18] sm:$0xff]
        %v187 = vld [vmem:[#allocation2 + $0x20] sm:$0xff]
        %v188 = vld [vmem:[#allocation2 + $0x28] sm:$0xff]
        %v189 = vld [vmem:[#allocation2 + $0x30] sm:$0xff]
        %v190 = vld [vmem:[#allocation2 + $0x38] sm:$0xff]
        %v191 = vld [vmem:[#allocation2 + $0x40] sm:$0xff]
        %v192 = vld [vmem:[#allocation2 + $0x48] sm:$0xff]
        %v193 = vld [vmem:[#allocation2 + $0x50] sm:$0xff]
        %v194 = vld [vmem:[#allocation2 + $0x58] sm:$0xff]
        %v195 = vld [vmem:[#allocation2 + $0x60] sm:$0xff]
        %v196 = vld [vmem:[#allocation2 + $0x68] sm:$0xff]
        %v197 = vld [vmem:[#allocation2 + $0x70] sm:$0xff]
        %v198 = vld [vmem:[#allocation2 + $0x78] sm:$0xff]
        %v199 = vld [vmem:[%s2] sm:$0x1]
        %v200 = vld [vmem:[%s2 + $0x1] sm:$0x1]
        %v201 = vld [vmem:[%s2 + $0x2] sm:$0x1]
        %v202 = vld [vmem:[%s178] sm:$0xf]
        %vm203 = vcmask 261120
        %v205 = vsel %vm203, %v202, 0
        %207 = vmatpush.msra.mxu0 0.0
        %208 = vmatpush.msra.mxu0 0.0
        %209 = vmatpush.msra.mxu0 0.0
        %210 = vmatpush.msra.mxu0 0.0
        %211 = vmatpush.msra.mxu0 0.0
        %212 = vmatpush.msra.mxu0 0.0
        %213 = vmatpush.msra.mxu0 0.0
        %214 = vmatpush.msra.mxu0 0.0
        %215 = vmatpush.msra.mxu0 0.0
        %216 = vmatpush.msra.mxu0 0.0
        %217 = vmatpush.msra.mxu0 0.0
        %218 = vmatpush.msra.mxu0 0.0
        %219 = vmatpush.msra.mxu0 %v190
        %220 = vmatpush.msra.mxu0 %v189
        %221 = vmatpush.msra.mxu0 %v188
        %222 = vmatpush.msra.mxu0 %v187
        %223 = vmatmul.f32.gmra.mxu0 %v205
        %v224 = vpop.f32.mrf.mxu0
        %v225 = vadd.f32 %v199, %v224
        %226 = vdwg.mxu0
        %v227 = vxor.u32 %v225, 2147483648
        %v228 = vmul.f32 %v227, 1.442695
        %v229 = vpow.pop %v228
        %v230 = vadd.f32 %v229, 1.0
        %v231 = vrcp.pop %v230
        %v232 = vmul.f32 %v230, %v231
        %v233 = vsub.f32 1.0, %v232
        %v234 = vmul.f32 %v231, %v233
        %v235 = vadd.f32 %v231, %v234
        %vm236 = vweird.f32 %v230
        %vm237 = vweird.f32 %v231
        %vm238 = vmor %vm236, %vm237
        %v239 = vsel %vm238, %v231, %v235
        %v240 = vand.u32 2147483647, %v230
        %vm241 = vcmp.eq.f32.partialorder %v240, 8.507059e+37
        %v242 = vand.u32 %v230, 2147483648
        %v243 = vor.u32 1.1754944e-38, %v242
        %v244 = vsel %vm241, %v243, %v239
        %v245 = vmul.f32 1.0, %v244
        %v246 = vtanh.pop %v225
        %v247 = vrot.slane %v202, 1
        %248 = vrot.lane.b32.xlu0 %v247, 32
        %v249 = vpop.permute.xlu0 %248
        %v251 = vmul.f32 %v245, %v249
        %253 = vrot.lane.b32.xlu0 %v246, 64
        %v254 = vpop.permute.xlu0 %253
        %v256 = vmul.f32 %v245, %v254
        %258 = vrot.lane.b32.xlu0 %v256, 32
        %v259 = vpop.permute.xlu0 %258
        %v261 = vadd.f32 %v251, %v259
        %v262 = vtanh.pop %v261
        %264 = vrot.lane.b32.xlu0 %v262, 64
        %v265 = vpop.permute.xlu0 %264
        %v267 = vmul.f32 %v245, %v265
        %269 = vrot.lane.b32.xlu0 %v267, 32
        %v270 = vpop.permute.xlu0 %269
        %v271 = vsel %vm203, %v270, 0
        %273 = vmatpush.msra.mxu0 0.0
        %274 = vmatpush.msra.mxu0 0.0
        %275 = vmatpush.msra.mxu0 0.0
        %276 = vmatpush.msra.mxu0 0.0
        %277 = vmatpush.msra.mxu0 0.0
        %278 = vmatpush.msra.mxu0 0.0
        %279 = vmatpush.msra.mxu0 0.0
        %280 = vmatpush.msra.mxu0 0.0
        %281 = vmatpush.msra.mxu0 0.0
        %282 = vmatpush.msra.mxu0 0.0
        %283 = vmatpush.msra.mxu0 0.0
        %284 = vmatpush.msra.mxu0 0.0
        %285 = vmatpush.msra.mxu0 %v194
        %286 = vmatpush.msra.mxu0 %v193
        %287 = vmatpush.msra.mxu0 %v192
        %288 = vmatpush.msra.mxu0 %v191
        %289 = vmatmul.f32.gmra.mxu0 %v271
        %v290 = vpop.f32.mrf.mxu0
        %v291 = vadd.f32 0.0, %v290
        %292 = vdwg.mxu0
        %v293 = vrot.slane %v202, 2
        %v294 = vsel %vm203, %v293, 0
        %296 = vmatpush.msra.mxu0 0.0
        %297 = vmatpush.msra.mxu0 0.0
        %298 = vmatpush.msra.mxu0 0.0
        %299 = vmatpush.msra.mxu0 0.0
        %300 = vmatpush.msra.mxu0 0.0
        %301 = vmatpush.msra.mxu0 0.0
        %302 = vmatpush.msra.mxu0 0.0
        %303 = vmatpush.msra.mxu0 0.0
        %304 = vmatpush.msra.mxu0 0.0
        %305 = vmatpush.msra.mxu0 0.0
        %306 = vmatpush.msra.mxu0 0.0
        %307 = vmatpush.msra.mxu0 0.0
        %308 = vmatpush.msra.mxu0 %v198
        %309 = vmatpush.msra.mxu0 %v197
        %310 = vmatpush.msra.mxu0 %v196
        %311 = vmatpush.msra.mxu0 %v195
        %312 = vmatmul.f32.gmra.mxu0 %v294
        %v313 = vpop.f32.mrf.mxu0
        %v314 = vadd.f32 %v291, %v313
        %315 = vdwg.mxu0
        %v316 = vadd.f32 %v314, %v201
        %v317 = vxor.u32 %v316, 2147483648
        %v318 = vmul.f32 %v317, 1.442695
        %v319 = vpow.pop %v318
        %v320 = vadd.f32 %v319, 1.0
        %v321 = vrcp.pop %v320
        %v322 = vmul.f32 %v320, %v321
        %v323 = vsub.f32 1.0, %v322
        %v324 = vmul.f32 %v321, %v323
        %v325 = vadd.f32 %v321, %v324
        %vm326 = vweird.f32 %v320
        %vm327 = vweird.f32 %v321
        %vm328 = vmor %vm326, %vm327
        %v329 = vsel %vm328, %v321, %v325
        %v330 = vand.u32 2147483647, %v320
        %vm331 = vcmp.eq.f32.partialorder %v330, 8.507059e+37
        %v332 = vand.u32 %v320, 2147483648
        %v333 = vor.u32 1.1754944e-38, %v332
        %v334 = vsel %vm331, %v333, %v329
        %v335 = vmul.f32 1.0, %v334
        %v336 = vtanh.pop %v316
        %v337 = vrot.slane %v202, 3
        %338 = vrot.lane.b32.xlu0 %v337, 32
        %v339 = vpop.permute.xlu0 %338
        %v341 = vmul.f32 %v335, %v339
        %343 = vrot.lane.b32.xlu0 %v336, 64
        %v344 = vpop.permute.xlu0 %343
        %v346 = vmul.f32 %v335, %v344
        %348 = vrot.lane.b32.xlu0 %v346, 32
        %v349 = vpop.permute.xlu0 %348
        %v351 = vadd.f32 %v341, %v349
        %v352 = vtanh.pop %v351
        %354 = vrot.lane.b32.xlu0 %v352, 64
        %v355 = vpop.permute.xlu0 %354
        %v357 = vmul.f32 %v335, %v355
        %358 = vmatpush.msra.mxu0 0.0
        %359 = vmatpush.msra.mxu0 0.0
        %360 = vmatpush.msra.mxu0 0.0
        %361 = vmatpush.msra.mxu0 0.0
        %362 = vmatpush.msra.mxu0 0.0
        %363 = vmatpush.msra.mxu0 0.0
        %364 = vmatpush.msra.mxu0 0.0
        %365 = vmatpush.msra.mxu0 0.0
        %366 = vmatpush.msra.mxu0 0.0
        %367 = vmatpush.msra.mxu0 0.0
        %368 = vmatpush.msra.mxu0 0.0
        %369 = vmatpush.msra.mxu0 0.0
        %370 = vmatpush.msra.mxu0 %v190
        %371 = vmatpush.msra.mxu0 %v189
        %372 = vmatpush.msra.mxu0 %v188
        %373 = vmatpush.msra.mxu0 %v187
        %374 = vmatmul.f32.gmra.mxu0 %v271
        %v375 = vpop.f32.mrf.mxu0
        %v376 = vadd.f32 0.0, %v375
        %377 = vdwg.mxu0
        %379 = vrot.lane.b32.xlu0 %v357, 32
        %v380 = vpop.permute.xlu0 %379
        %v381 = vsel %vm203, %v380, 0
        %383 = vmatpush.msra.mxu0 0.0
        %384 = vmatpush.msra.mxu0 0.0
        %385 = vmatpush.msra.mxu0 0.0
        %386 = vmatpush.msra.mxu0 0.0
        %387 = vmatpush.msra.mxu0 0.0
        %388 = vmatpush.msra.mxu0 0.0
        %389 = vmatpush.msra.mxu0 0.0
        %390 = vmatpush.msra.mxu0 0.0
        %391 = vmatpush.msra.mxu0 0.0
        %392 = vmatpush.msra.mxu0 0.0
        %393 = vmatpush.msra.mxu0 0.0
        %394 = vmatpush.msra.mxu0 0.0
        %395 = vmatpush.msra.mxu0 %v186
        %396 = vmatpush.msra.mxu0 %v185
        %397 = vmatpush.msra.mxu0 %v184
        %398 = vmatpush.msra.mxu0 %v183
        %399 = vmatmul.f32.gmra.mxu0 %v381
        %v400 = vpop.f32.mrf.mxu0
        %v401 = vadd.f32 %v376, %v400
        %402 = vdwg.mxu0
        %v403 = vadd.f32 %v401, %v200
        %v404 = vxor.u32 %v403, 2147483648
        %v405 = vmul.f32 %v404, 1.442695
        %v406 = vpow.pop %v405
        %v407 = vadd.f32 %v406, 1.0
        %v408 = vrcp.pop %v407
        %v409 = vmul.f32 %v407, %v408
        %v410 = vsub.f32 1.0, %v409
        %v411 = vmul.f32 %v408, %v410
        %v412 = vadd.f32 %v408, %v411
        %vm413 = vweird.f32 %v407
        %vm414 = vweird.f32 %v408
        %vm415 = vmor %vm413, %vm414
        %v416 = vsel %vm415, %v408, %v412
        %v417 = vand.u32 2147483647, %v407
        %vm418 = vcmp.eq.f32.partialorder %v417, 8.507059e+37
        %v419 = vand.u32 %v407, 2147483648
        %v420 = vor.u32 1.1754944e-38, %v419
        %v421 = vsel %vm418, %v420, %v416
        %v422 = vmul.f32 1.0, %v421
        %v423 = vtanh.pop %v403
        %v424 = vmul.f32 %v422, %v261
        %426 = vrot.lane.b32.xlu0 %v423, 64
        %v427 = vpop.permute.xlu0 %426
        %v429 = vmul.f32 %v422, %v427
        %431 = vrot.lane.b32.xlu0 %v429, 32
        %v432 = vpop.permute.xlu0 %431
        %v434 = vadd.f32 %v424, %v432
        %v435 = vtanh.pop %v434
        %437 = vrot.lane.b32.xlu0 %v435, 64
        %v438 = vpop.permute.xlu0 %437
        %v440 = vmul.f32 %v422, %v438
        %442 = vrot.lane.b32.xlu0 %v440, 32
        %v443 = vpop.permute.xlu0 %442
        %v444 = vsel %vm203, %v443, 0
        %446 = vmatpush.msra.mxu0 0.0
        %447 = vmatpush.msra.mxu0 0.0
        %448 = vmatpush.msra.mxu0 0.0
        %449 = vmatpush.msra.mxu0 0.0
        %450 = vmatpush.msra.mxu0 0.0
        %451 = vmatpush.msra.mxu0 0.0
        %452 = vmatpush.msra.mxu0 0.0
        %453 = vmatpush.msra.mxu0 0.0
        %454 = vmatpush.msra.mxu0 0.0
        %455 = vmatpush.msra.mxu0 0.0
        %456 = vmatpush.msra.mxu0 0.0
        %457 = vmatpush.msra.mxu0 0.0
        %458 = vmatpush.msra.mxu0 %v194
        %459 = vmatpush.msra.mxu0 %v193
        %460 = vmatpush.msra.mxu0 %v192
        %461 = vmatpush.msra.mxu0 %v191
        %462 = vmatmul.f32.gmra.mxu0 %v444
        %v463 = vpop.f32.mrf.mxu0
        %v464 = vadd.f32 0.0, %v463
        %465 = vdwg.mxu0
        %466 = vmatpush.msra.mxu0 0.0
        %467 = vmatpush.msra.mxu0 0.0
        %468 = vmatpush.msra.mxu0 0.0
        %469 = vmatpush.msra.mxu0 0.0
        %470 = vmatpush.msra.mxu0 0.0
        %471 = vmatpush.msra.mxu0 0.0
        %472 = vmatpush.msra.mxu0 0.0
        %473 = vmatpush.msra.mxu0 0.0
        %474 = vmatpush.msra.mxu0 0.0
        %475 = vmatpush.msra.mxu0 0.0
        %476 = vmatpush.msra.mxu0 0.0
        %477 = vmatpush.msra.mxu0 0.0
        %478 = vmatpush.msra.mxu0 %v198
        %479 = vmatpush.msra.mxu0 %v197
        %480 = vmatpush.msra.mxu0 %v196
        %481 = vmatpush.msra.mxu0 %v195
        %482 = vmatmul.f32.gmra.mxu0 %v381
        %v483 = vpop.f32.mrf.mxu0
        %v484 = vadd.f32 %v464, %v483
        %485 = vdwg.mxu0
        %v486 = vadd.f32 %v484, %v201
        %v487 = vxor.u32 %v486, 2147483648
        %v488 = vmul.f32 %v487, 1.442695
        %v489 = vpow.pop %v488
        %v490 = vadd.f32 %v489, 1.0
        %v491 = vrcp.pop %v490
        %v492 = vmul.f32 %v490, %v491
        %v493 = vsub.f32 1.0, %v492
        %v494 = vmul.f32 %v491, %v493
        %v495 = vadd.f32 %v491, %v494
        %vm496 = vweird.f32 %v490
        %vm497 = vweird.f32 %v491
        %vm498 = vmor %vm496, %vm497
        %v499 = vsel %vm498, %v491, %v495
        %v500 = vand.u32 2147483647, %v490
        %vm501 = vcmp.eq.f32.partialorder %v500, 8.507059e+37
        %v502 = vand.u32 %v490, 2147483648
        %v503 = vor.u32 1.1754944e-38, %v502
        %v504 = vsel %vm501, %v503, %v499
        %v505 = vmul.f32 1.0, %v504
        %v506 = vtanh.pop %v486
        %v507 = vmul.f32 %v505, %v351
        %509 = vrot.lane.b32.xlu0 %v506, 64
        %v510 = vpop.permute.xlu0 %509
        %v512 = vmul.f32 %v505, %v510
        %514 = vrot.lane.b32.xlu0 %v512, 32
        %v515 = vpop.permute.xlu0 %514
        %v517 = vadd.f32 %v507, %v515
        %v518 = vtanh.pop %v517
        %520 = vrot.lane.b32.xlu0 %v518, 64
        %v521 = vpop.permute.xlu0 %520
        %v523 = vmul.f32 %v505, %v521
        %524 = vmatpush.msra.mxu0 0.0
        %525 = vmatpush.msra.mxu0 0.0
        %526 = vmatpush.msra.mxu0 0.0
        %527 = vmatpush.msra.mxu0 0.0
        %528 = vmatpush.msra.mxu0 0.0
        %529 = vmatpush.msra.mxu0 0.0
        %530 = vmatpush.msra.mxu0 0.0
        %531 = vmatpush.msra.mxu0 0.0
        %532 = vmatpush.msra.mxu0 0.0
        %533 = vmatpush.msra.mxu0 0.0
        %534 = vmatpush.msra.mxu0 0.0
        %535 = vmatpush.msra.mxu0 0.0
        %536 = vmatpush.msra.mxu0 %v190
        %537 = vmatpush.msra.mxu0 %v189
        %538 = vmatpush.msra.mxu0 %v188
        %539 = vmatpush.msra.mxu0 %v187
        %540 = vmatmul.f32.gmra.mxu0 %v444
        %v541 = vpop.f32.mrf.mxu0
        %v542 = vadd.f32 0.0, %v541
        %543 = vdwg.mxu0
        %545 = vrot.lane.b32.xlu0 %v523, 32
        %v546 = vpop.permute.xlu0 %545
        %v547 = vsel %vm203, %v546, 0
        %549 = vmatpush.msra.mxu0 0.0
        %550 = vmatpush.msra.mxu0 0.0
        %551 = vmatpush.msra.mxu0 0.0
        %552 = vmatpush.msra.mxu0 0.0
        %553 = vmatpush.msra.mxu0 0.0
        %554 = vmatpush.msra.mxu0 0.0
        %555 = vmatpush.msra.mxu0 0.0
        %556 = vmatpush.msra.mxu0 0.0
        %557 = vmatpush.msra.mxu0 0.0
        %558 = vmatpush.msra.mxu0 0.0
        %559 = vmatpush.msra.mxu0 0.0
        %560 = vmatpush.msra.mxu0 0.0
        %561 = vmatpush.msra.mxu0 %v186
        %562 = vmatpush.msra.mxu0 %v185
        %563 = vmatpush.msra.mxu0 %v184
        %564 = vmatpush.msra.mxu0 %v183
        %565 = vmatmul.f32.gmra.mxu0 %v547
        %v566 = vpop.f32.mrf.mxu0
        %v567 = vadd.f32 %v542, %v566
        %568 = vdwg.mxu0
        %v569 = vadd.f32 %v567, %v200
        %v570 = vxor.u32 %v569, 2147483648
        %v571 = vmul.f32 %v570, 1.442695
        %v572 = vpow.pop %v571
        %v573 = vadd.f32 %v572, 1.0
        %v574 = vrcp.pop %v573
        %v575 = vmul.f32 %v573, %v574
        %v576 = vsub.f32 1.0, %v575
        %v577 = vmul.f32 %v574, %v576
        %v578 = vadd.f32 %v574, %v577
        %vm579 = vweird.f32 %v573
        %vm580 = vweird.f32 %v574
        %vm581 = vmor %vm579, %vm580
        %v582 = vsel %vm581, %v574, %v578
        %v583 = vand.u32 2147483647, %v573
        %vm584 = vcmp.eq.f32.partialorder %v583, 8.507059e+37
        %v585 = vand.u32 %v573, 2147483648
        %v586 = vor.u32 1.1754944e-38, %v585
        %v587 = vsel %vm584, %v586, %v582
        %v588 = vmul.f32 1.0, %v587
        %v589 = vtanh.pop %v569
        %v590 = vmul.f32 %v588, %v434
        %592 = vrot.lane.b32.xlu0 %v589, 64
        %v593 = vpop.permute.xlu0 %592
        %v595 = vmul.f32 %v588, %v593
        %597 = vrot.lane.b32.xlu0 %v595, 32
        %v598 = vpop.permute.xlu0 %597
        %v600 = vadd.f32 %v590, %v598
        %v601 = vtanh.pop %v600
        %603 = vrot.lane.b32.xlu0 %v601, 64
        %v604 = vpop.permute.xlu0 %603
        %v606 = vmul.f32 %v588, %v604
        %608 = vrot.lane.b32.xlu0 %v606, 32
        %v609 = vpop.permute.xlu0 %608
        %v610 = vsel %vm203, %v609, 0
        %612 = vmatpush.msra.mxu0 0.0
        %613 = vmatpush.msra.mxu0 0.0
        %614 = vmatpush.msra.mxu0 0.0
        %615 = vmatpush.msra.mxu0 0.0
        %616 = vmatpush.msra.mxu0 0.0
        %617 = vmatpush.msra.mxu0 0.0
        %618 = vmatpush.msra.mxu0 0.0
        %619 = vmatpush.msra.mxu0 0.0
        %620 = vmatpush.msra.mxu0 0.0
        %621 = vmatpush.msra.mxu0 0.0
        %622 = vmatpush.msra.mxu0 0.0
        %623 = vmatpush.msra.mxu0 0.0
        %624 = vmatpush.msra.mxu0 %v194
        %625 = vmatpush.msra.mxu0 %v193
        %626 = vmatpush.msra.mxu0 %v192
        %627 = vmatpush.msra.mxu0 %v191
        %628 = vmatmul.f32.gmra.mxu0 %v610
        %v629 = vpop.f32.mrf.mxu0
        %v630 = vadd.f32 0.0, %v629
        %631 = vdwg.mxu0
        %632 = vmatpush.msra.mxu0 0.0
        %633 = vmatpush.msra.mxu0 0.0
        %634 = vmatpush.msra.mxu0 0.0
        %635 = vmatpush.msra.mxu0 0.0
        %636 = vmatpush.msra.mxu0 0.0
        %637 = vmatpush.msra.mxu0 0.0
        %638 = vmatpush.msra.mxu0 0.0
        %639 = vmatpush.msra.mxu0 0.0
        %640 = vmatpush.msra.mxu0 0.0
        %641 = vmatpush.msra.mxu0 0.0
        %642 = vmatpush.msra.mxu0 0.0
        %643 = vmatpush.msra.mxu0 0.0
        %644 = vmatpush.msra.mxu0 %v198
        %645 = vmatpush.msra.mxu0 %v197
        %646 = vmatpush.msra.mxu0 %v196
        %647 = vmatpush.msra.mxu0 %v195
        %648 = vmatmul.f32.gmra.mxu0 %v547
        %v649 = vpop.f32.mrf.mxu0
        %v650 = vadd.f32 %v630, %v649
        %651 = vdwg.mxu0
        %v652 = vadd.f32 %v650, %v201
        %v653 = vxor.u32 %v652, 2147483648
        %v654 = vmul.f32 %v653, 1.442695
        %v655 = vpow.pop %v654
        %v656 = vadd.f32 %v655, 1.0
        %v657 = vrcp.pop %v656
        %v658 = vmul.f32 %v656, %v657
        %v659 = vsub.f32 1.0, %v658
        %v660 = vmul.f32 %v657, %v659
        %v661 = vadd.f32 %v657, %v660
        %vm662 = vweird.f32 %v656
        %vm663 = vweird.f32 %v657
        %vm664 = vmor %vm662, %vm663
        %v665 = vsel %vm664, %v657, %v661
        %v666 = vand.u32 2147483647, %v656
        %vm667 = vcmp.eq.f32.partialorder %v666, 8.507059e+37
        %v668 = vand.u32 %v656, 2147483648
        %v669 = vor.u32 1.1754944e-38, %v668
        %v670 = vsel %vm667, %v669, %v665
        %v671 = vmul.f32 1.0, %v670
        %v672 = vtanh.pop %v652
        %v673 = vmul.f32 %v671, %v517
        %675 = vrot.lane.b32.xlu0 %v672, 64
        %v676 = vpop.permute.xlu0 %675
        %v678 = vmul.f32 %v671, %v676
        %680 = vrot.lane.b32.xlu0 %v678, 32
        %v681 = vpop.permute.xlu0 %680
        %v683 = vadd.f32 %v673, %v681
        %v684 = vtanh.pop %v683
        %686 = vrot.lane.b32.xlu0 %v684, 64
        %v687 = vpop.permute.xlu0 %686
        %v689 = vmul.f32 %v671, %v687
        %690 = vmatpush.msra.mxu0 0.0
        %691 = vmatpush.msra.mxu0 0.0
        %692 = vmatpush.msra.mxu0 0.0
        %693 = vmatpush.msra.mxu0 0.0
        %694 = vmatpush.msra.mxu0 0.0
        %695 = vmatpush.msra.mxu0 0.0
        %696 = vmatpush.msra.mxu0 0.0
        %697 = vmatpush.msra.mxu0 0.0
        %698 = vmatpush.msra.mxu0 0.0
        %699 = vmatpush.msra.mxu0 0.0
        %700 = vmatpush.msra.mxu0 0.0
        %701 = vmatpush.msra.mxu0 0.0
        %702 = vmatpush.msra.mxu0 %v190
        %703 = vmatpush.msra.mxu0 %v189
        %704 = vmatpush.msra.mxu0 %v188
        %705 = vmatpush.msra.mxu0 %v187
        %706 = vmatmul.f32.gmra.mxu0 %v610
        %v707 = vpop.f32.mrf.mxu0
        %v708 = vadd.f32 0.0, %v707
        %709 = vdwg.mxu0
        %711 = vrot.lane.b32.xlu0 %v689, 32
        %v712 = vpop.permute.xlu0 %711
        %v713 = vsel %vm203, %v712, 0
        %715 = vmatpush.msra.mxu0 0.0
        %716 = vmatpush.msra.mxu0 0.0
        %717 = vmatpush.msra.mxu0 0.0
        %718 = vmatpush.msra.mxu0 0.0
        %719 = vmatpush.msra.mxu0 0.0
        %720 = vmatpush.msra.mxu0 0.0
        %721 = vmatpush.msra.mxu0 0.0
        %722 = vmatpush.msra.mxu0 0.0
        %723 = vmatpush.msra.mxu0 0.0
        %724 = vmatpush.msra.mxu0 0.0
        %725 = vmatpush.msra.mxu0 0.0
        %726 = vmatpush.msra.mxu0 0.0
        %727 = vmatpush.msra.mxu0 %v186
        %728 = vmatpush.msra.mxu0 %v185
        %729 = vmatpush.msra.mxu0 %v184
        %730 = vmatpush.msra.mxu0 %v183
        %731 = vmatmul.f32.gmra.mxu0 %v713
        %v732 = vpop.f32.mrf.mxu0
        %v733 = vadd.f32 %v708, %v732
        %734 = vdwg.mxu0
        %v735 = vadd.f32 %v733, %v200
        %v736 = vxor.u32 %v735, 2147483648
        %v737 = vmul.f32 %v736, 1.442695
        %v738 = vpow.pop %v737
        %v739 = vadd.f32 %v738, 1.0
        %v740 = vrcp.pop %v739
        %v741 = vmul.f32 %v739, %v740
        %v742 = vsub.f32 1.0, %v741
        %v743 = vmul.f32 %v740, %v742
        %v744 = vadd.f32 %v740, %v743
        %vm745 = vweird.f32 %v739
        %vm746 = vweird.f32 %v740
        %vm747 = vmor %vm745, %vm746
        %v748 = vsel %vm747, %v740, %v744
        %v749 = vand.u32 2147483647, %v739
        %vm750 = vcmp.eq.f32.partialorder %v749, 8.507059e+37
        %v751 = vand.u32 %v739, 2147483648
        %v752 = vor.u32 1.1754944e-38, %v751
        %v753 = vsel %vm750, %v752, %v748
        %v754 = vmul.f32 1.0, %v753
        %v755 = vtanh.pop %v735
        %v756 = vmul.f32 %v754, %v600
        %758 = vrot.lane.b32.xlu0 %v755, 64
        %v759 = vpop.permute.xlu0 %758
        %v761 = vmul.f32 %v754, %v759
        %763 = vrot.lane.b32.xlu0 %v761, 32
        %v764 = vpop.permute.xlu0 %763
        %v766 = vadd.f32 %v756, %v764
        %v767 = vtanh.pop %v766
        %769 = vrot.lane.b32.xlu0 %v767, 64
        %v770 = vpop.permute.xlu0 %769
        %v772 = vmul.f32 %v754, %v770
        %774 = vrot.lane.b32.xlu0 %v772, 32
        %v775 = vpop.permute.xlu0 %774
        %v776 = vsel %vm203, %v775, 0
        %778 = vmatpush.msra.mxu0 0.0
        %779 = vmatpush.msra.mxu0 0.0
        %780 = vmatpush.msra.mxu0 0.0
        %781 = vmatpush.msra.mxu0 0.0
        %782 = vmatpush.msra.mxu0 0.0
        %783 = vmatpush.msra.mxu0 0.0
        %784 = vmatpush.msra.mxu0 0.0
        %785 = vmatpush.msra.mxu0 0.0
        %786 = vmatpush.msra.mxu0 0.0
        %787 = vmatpush.msra.mxu0 0.0
        %788 = vmatpush.msra.mxu0 0.0
        %789 = vmatpush.msra.mxu0 0.0
        %790 = vmatpush.msra.mxu0 %v194
        %791 = vmatpush.msra.mxu0 %v193
        %792 = vmatpush.msra.mxu0 %v192
        %793 = vmatpush.msra.mxu0 %v191
        %794 = vmatmul.f32.gmra.mxu0 %v776
        %v795 = vpop.f32.mrf.mxu0
        %v796 = vadd.f32 0.0, %v795
        %797 = vdwg.mxu0
        %798 = vmatpush.msra.mxu0 0.0
        %799 = vmatpush.msra.mxu0 0.0
        %800 = vmatpush.msra.mxu0 0.0
        %801 = vmatpush.msra.mxu0 0.0
        %802 = vmatpush.msra.mxu0 0.0
        %803 = vmatpush.msra.mxu0 0.0
        %804 = vmatpush.msra.mxu0 0.0
        %805 = vmatpush.msra.mxu0 0.0
        %806 = vmatpush.msra.mxu0 0.0
        %807 = vmatpush.msra.mxu0 0.0
        %808 = vmatpush.msra.mxu0 0.0
        %809 = vmatpush.msra.mxu0 0.0
        %810 = vmatpush.msra.mxu0 %v198
        %811 = vmatpush.msra.mxu0 %v197
        %812 = vmatpush.msra.mxu0 %v196
        %813 = vmatpush.msra.mxu0 %v195
        %814 = vmatmul.f32.gmra.mxu0 %v713
        %v815 = vpop.f32.mrf.mxu0
        %v816 = vadd.f32 %v796, %v815
        %817 = vdwg.mxu0
        %v818 = vadd.f32 %v816, %v201
        %v819 = vxor.u32 %v818, 2147483648
        %v820 = vmul.f32 %v819, 1.442695
        %v821 = vpow.pop %v820
        %v822 = vadd.f32 %v821, 1.0
        %v823 = vrcp.pop %v822
        %v824 = vmul.f32 %v822, %v823
        %v825 = vsub.f32 1.0, %v824
        %v826 = vmul.f32 %v823, %v825
        %v827 = vadd.f32 %v823, %v826
        %vm828 = vweird.f32 %v822
        %vm829 = vweird.f32 %v823
        %vm830 = vmor %vm828, %vm829
        %v831 = vsel %vm830, %v823, %v827
        %v832 = vand.u32 2147483647, %v822
        %vm833 = vcmp.eq.f32.partialorder %v832, 8.507059e+37
        %v834 = vand.u32 %v822, 2147483648
        %v835 = vor.u32 1.1754944e-38, %v834
        %v836 = vsel %vm833, %v835, %v831
        %v837 = vmul.f32 1.0, %v836
        %v838 = vtanh.pop %v818
        %v839 = vmul.f32 %v837, %v683
        %841 = vrot.lane.b32.xlu0 %v838, 64
        %v842 = vpop.permute.xlu0 %841
        %v844 = vmul.f32 %v837, %v842
        %846 = vrot.lane.b32.xlu0 %v844, 32
        %v847 = vpop.permute.xlu0 %846
        %v849 = vadd.f32 %v839, %v847
        %v850 = vtanh.pop %v849
        %852 = vrot.lane.b32.xlu0 %v850, 64
        %v853 = vpop.permute.xlu0 %852
        %v855 = vmul.f32 %v837, %v853
        %856 = vmatpush.msra.mxu0 0.0
        %857 = vmatpush.msra.mxu0 0.0
        %858 = vmatpush.msra.mxu0 0.0
        %859 = vmatpush.msra.mxu0 0.0
        %860 = vmatpush.msra.mxu0 0.0
        %861 = vmatpush.msra.mxu0 0.0
        %862 = vmatpush.msra.mxu0 0.0
        %863 = vmatpush.msra.mxu0 0.0
        %864 = vmatpush.msra.mxu0 0.0
        %865 = vmatpush.msra.mxu0 0.0
        %866 = vmatpush.msra.mxu0 0.0
        %867 = vmatpush.msra.mxu0 0.0
        %868 = vmatpush.msra.mxu0 %v190
        %869 = vmatpush.msra.mxu0 %v189
        %870 = vmatpush.msra.mxu0 %v188
        %871 = vmatpush.msra.mxu0 %v187
        %872 = vmatmul.f32.gmra.mxu0 %v776
        %v873 = vpop.f32.mrf.mxu0
        %v874 = vadd.f32 0.0, %v873
        %875 = vdwg.mxu0
        %877 = vrot.lane.b32.xlu0 %v855, 32
        %v878 = vpop.permute.xlu0 %877
        %v879 = vsel %vm203, %v878, 0
        %881 = vmatpush.msra.mxu0 0.0
        %882 = vmatpush.msra.mxu0 0.0
        %883 = vmatpush.msra.mxu0 0.0
        %884 = vmatpush.msra.mxu0 0.0
        %885 = vmatpush.msra.mxu0 0.0
        %886 = vmatpush.msra.mxu0 0.0
        %887 = vmatpush.msra.mxu0 0.0
        %888 = vmatpush.msra.mxu0 0.0
        %889 = vmatpush.msra.mxu0 0.0
        %890 = vmatpush.msra.mxu0 0.0
        %891 = vmatpush.msra.mxu0 0.0
        %892 = vmatpush.msra.mxu0 0.0
        %893 = vmatpush.msra.mxu0 %v186
        %894 = vmatpush.msra.mxu0 %v185
        %895 = vmatpush.msra.mxu0 %v184
        %896 = vmatpush.msra.mxu0 %v183
        %897 = vmatmul.f32.gmra.mxu0 %v879
        %v898 = vpop.f32.mrf.mxu0
        %v899 = vadd.f32 %v874, %v898
        %900 = vdwg.mxu0
        %v901 = vadd.f32 %v899, %v200
        %v902 = vxor.u32 %v901, 2147483648
        %v903 = vmul.f32 %v902, 1.442695
        %v904 = vpow.pop %v903
        %v905 = vadd.f32 %v904, 1.0
        %v906 = vrcp.pop %v905
        %v907 = vmul.f32 %v905, %v906
        %v908 = vsub.f32 1.0, %v907
        %v909 = vmul.f32 %v906, %v908
        %v910 = vadd.f32 %v906, %v909
        %vm911 = vweird.f32 %v905
        %vm912 = vweird.f32 %v906
        %vm913 = vmor %vm911, %vm912
        %v914 = vsel %vm913, %v906, %v910
        %v915 = vand.u32 2147483647, %v905
        %vm916 = vcmp.eq.f32.partialorder %v915, 8.507059e+37
        %v917 = vand.u32 %v905, 2147483648
        %v918 = vor.u32 1.1754944e-38, %v917
        %v919 = vsel %vm916, %v918, %v914
        %v920 = vmul.f32 1.0, %v919
        %v921 = vtanh.pop %v901
        %v922 = vmul.f32 %v920, %v766
        %924 = vrot.lane.b32.xlu0 %v921, 64
        %v925 = vpop.permute.xlu0 %924
        %v927 = vmul.f32 %v920, %v925
        %929 = vrot.lane.b32.xlu0 %v927, 32
        %v930 = vpop.permute.xlu0 %929
        %v932 = vadd.f32 %v922, %v930
        %v933 = vtanh.pop %v932
        %935 = vrot.lane.b32.xlu0 %v933, 64
        %v936 = vpop.permute.xlu0 %935
        %v938 = vmul.f32 %v920, %v936
        %940 = vrot.lane.b32.xlu0 %v938, 32
        %v941 = vpop.permute.xlu0 %940
        %v942 = vsel %vm203, %v941, 0
        %944 = vmatpush.msra.mxu0 0.0
        %945 = vmatpush.msra.mxu0 0.0
        %946 = vmatpush.msra.mxu0 0.0
        %947 = vmatpush.msra.mxu0 0.0
        %948 = vmatpush.msra.mxu0 0.0
        %949 = vmatpush.msra.mxu0 0.0
        %950 = vmatpush.msra.mxu0 0.0
        %951 = vmatpush.msra.mxu0 0.0
        %952 = vmatpush.msra.mxu0 0.0
        %953 = vmatpush.msra.mxu0 0.0
        %954 = vmatpush.msra.mxu0 0.0
        %955 = vmatpush.msra.mxu0 0.0
        %956 = vmatpush.msra.mxu0 %v194
        %957 = vmatpush.msra.mxu0 %v193
        %958 = vmatpush.msra.mxu0 %v192
        %959 = vmatpush.msra.mxu0 %v191
        %960 = vmatmul.f32.gmra.mxu0 %v942
        %v961 = vpop.f32.mrf.mxu0
        %v962 = vadd.f32 0.0, %v961
        %963 = vdwg.mxu0
        %964 = vmatpush.msra.mxu0 0.0
        %965 = vmatpush.msra.mxu0 0.0
        %966 = vmatpush.msra.mxu0 0.0
        %967 = vmatpush.msra.mxu0 0.0
        %968 = vmatpush.msra.mxu0 0.0
        %969 = vmatpush.msra.mxu0 0.0
        %970 = vmatpush.msra.mxu0 0.0
        %971 = vmatpush.msra.mxu0 0.0
        %972 = vmatpush.msra.mxu0 0.0
        %973 = vmatpush.msra.mxu0 0.0
        %974 = vmatpush.msra.mxu0 0.0
        %975 = vmatpush.msra.mxu0 0.0
        %976 = vmatpush.msra.mxu0 %v198
        %977 = vmatpush.msra.mxu0 %v197
        %978 = vmatpush.msra.mxu0 %v196
        %979 = vmatpush.msra.mxu0 %v195
        %980 = vmatmul.f32.gmra.mxu0 %v879
        %v981 = vpop.f32.mrf.mxu0
        %v982 = vadd.f32 %v962, %v981
        %983 = vdwg.mxu0
        %v984 = vadd.f32 %v982, %v201
        %v985 = vxor.u32 %v984, 2147483648
        %v986 = vmul.f32 %v985, 1.442695
        %v987 = vpow.pop %v986
        %v988 = vadd.f32 %v987, 1.0
        %v989 = vrcp.pop %v988
        %v990 = vmul.f32 %v988, %v989
        %v991 = vsub.f32 1.0, %v990
        %v992 = vmul.f32 %v989, %v991
        %v993 = vadd.f32 %v989, %v992
        %vm994 = vweird.f32 %v988
        %vm995 = vweird.f32 %v989
        %vm996 = vmor %vm994, %vm995
        %v997 = vsel %vm996, %v989, %v993
        %v998 = vand.u32 2147483647, %v988
        %vm999 = vcmp.eq.f32.partialorder %v998, 8.507059e+37
        %v1000 = vand.u32 %v988, 2147483648
        %v1001 = vor.u32 1.1754944e-38, %v1000
        %v1002 = vsel %vm999, %v1001, %v997
        %v1003 = vmul.f32 1.0, %v1002
        %v1004 = vtanh.pop %v984
        %v1005 = vmul.f32 %v1003, %v849
        %1007 = vrot.lane.b32.xlu0 %v1004, 64
        %v1008 = vpop.permute.xlu0 %1007
        %v1010 = vmul.f32 %v1003, %v1008
        %1012 = vrot.lane.b32.xlu0 %v1010, 32
        %v1013 = vpop.permute.xlu0 %1012
        %v1015 = vadd.f32 %v1005, %v1013
        %v1016 = vtanh.pop %v1015
        %1018 = vrot.lane.b32.xlu0 %v1016, 64
        %v1019 = vpop.permute.xlu0 %1018
        %v1021 = vmul.f32 %v1003, %v1019
        %1022 = vmatpush.msra.mxu0 0.0
        %1023 = vmatpush.msra.mxu0 0.0
        %1024 = vmatpush.msra.mxu0 0.0
        %1025 = vmatpush.msra.mxu0 0.0
        %1026 = vmatpush.msra.mxu0 0.0
        %1027 = vmatpush.msra.mxu0 0.0
        %1028 = vmatpush.msra.mxu0 0.0
        %1029 = vmatpush.msra.mxu0 0.0
        %1030 = vmatpush.msra.mxu0 0.0
        %1031 = vmatpush.msra.mxu0 0.0
        %1032 = vmatpush.msra.mxu0 0.0
        %1033 = vmatpush.msra.mxu0 0.0
        %1034 = vmatpush.msra.mxu0 %v190
        %1035 = vmatpush.msra.mxu0 %v189
        %1036 = vmatpush.msra.mxu0 %v188
        %1037 = vmatpush.msra.mxu0 %v187
        %1038 = vmatmul.f32.gmra.mxu0 %v942
        %v1039 = vpop.f32.mrf.mxu0
        %v1040 = vadd.f32 0.0, %v1039
        %1041 = vdwg.mxu0
        %1043 = vrot.lane.b32.xlu0 %v1021, 32
        %v1044 = vpop.permute.xlu0 %1043
        %v1045 = vsel %vm203, %v1044, 0
        %1047 = vmatpush.msra.mxu0 0.0
        %1048 = vmatpush.msra.mxu0 0.0
        %1049 = vmatpush.msra.mxu0 0.0
        %1050 = vmatpush.msra.mxu0 0.0
        %1051 = vmatpush.msra.mxu0 0.0
        %1052 = vmatpush.msra.mxu0 0.0
        %1053 = vmatpush.msra.mxu0 0.0
        %1054 = vmatpush.msra.mxu0 0.0
        %1055 = vmatpush.msra.mxu0 0.0
        %1056 = vmatpush.msra.mxu0 0.0
        %1057 = vmatpush.msra.mxu0 0.0
        %1058 = vmatpush.msra.mxu0 0.0
        %1059 = vmatpush.msra.mxu0 %v186
        %1060 = vmatpush.msra.mxu0 %v185
        %1061 = vmatpush.msra.mxu0 %v184
        %1062 = vmatpush.msra.mxu0 %v183
        %1063 = vmatmul.f32.gmra.mxu0 %v1045
        %v1064 = vpop.f32.mrf.mxu0
        %v1065 = vadd.f32 %v1040, %v1064
        %1066 = vdwg.mxu0
        %v1067 = vadd.f32 %v1065, %v200
        %v1068 = vxor.u32 %v1067, 2147483648
        %v1069 = vmul.f32 %v1068, 1.442695
        %v1070 = vpow.pop %v1069
        %v1071 = vadd.f32 %v1070, 1.0
        %v1072 = vrcp.pop %v1071
        %v1073 = vmul.f32 %v1071, %v1072
        %v1074 = vsub.f32 1.0, %v1073
        %v1075 = vmul.f32 %v1072, %v1074
        %v1076 = vadd.f32 %v1072, %v1075
        %vm1077 = vweird.f32 %v1071
        %vm1078 = vweird.f32 %v1072
        %vm1079 = vmor %vm1077, %vm1078
        %v1080 = vsel %vm1079, %v1072, %v1076
        %v1081 = vand.u32 2147483647, %v1071
        %vm1082 = vcmp.eq.f32.partialorder %v1081, 8.507059e+37
        %v1083 = vand.u32 %v1071, 2147483648
        %v1084 = vor.u32 1.1754944e-38, %v1083
        %v1085 = vsel %vm1082, %v1084, %v1080
        %v1086 = vmul.f32 1.0, %v1085
        %v1087 = vtanh.pop %v1067
        %v1088 = vmul.f32 %v1086, %v932
        %1090 = vrot.lane.b32.xlu0 %v1087, 64
        %v1091 = vpop.permute.xlu0 %1090
        %v1093 = vmul.f32 %v1086, %v1091
        %1095 = vrot.lane.b32.xlu0 %v1093, 32
        %v1096 = vpop.permute.xlu0 %1095
        %v1098 = vadd.f32 %v1088, %v1096
        %v1099 = vtanh.pop %v1098
        %1101 = vrot.lane.b32.xlu0 %v1099, 64
        %v1102 = vpop.permute.xlu0 %1101
        %v1104 = vmul.f32 %v1086, %v1102
        %1106 = vrot.lane.b32.xlu0 %v1104, 32
        %v1107 = vpop.permute.xlu0 %1106
        %v1108 = vsel %vm203, %v1107, 0
        %1110 = vmatpush.msra.mxu0 0.0
        %1111 = vmatpush.msra.mxu0 0.0
        %1112 = vmatpush.msra.mxu0 0.0
        %1113 = vmatpush.msra.mxu0 0.0
        %1114 = vmatpush.msra.mxu0 0.0
        %1115 = vmatpush.msra.mxu0 0.0
        %1116 = vmatpush.msra.mxu0 0.0
        %1117 = vmatpush.msra.mxu0 0.0
        %1118 = vmatpush.msra.mxu0 0.0
        %1119 = vmatpush.msra.mxu0 0.0
        %1120 = vmatpush.msra.mxu0 0.0
        %1121 = vmatpush.msra.mxu0 0.0
        %1122 = vmatpush.msra.mxu0 %v194
        %1123 = vmatpush.msra.mxu0 %v193
        %1124 = vmatpush.msra.mxu0 %v192
        %1125 = vmatpush.msra.mxu0 %v191
        %1126 = vmatmul.f32.gmra.mxu0 %v1108
        %v1127 = vpop.f32.mrf.mxu0
        %v1128 = vadd.f32 0.0, %v1127
        %1129 = vdwg.mxu0
        %1130 = vmatpush.msra.mxu0 0.0
        %1131 = vmatpush.msra.mxu0 0.0
        %1132 = vmatpush.msra.mxu0 0.0
        %1133 = vmatpush.msra.mxu0 0.0
        %1134 = vmatpush.msra.mxu0 0.0
        %1135 = vmatpush.msra.mxu0 0.0
        %1136 = vmatpush.msra.mxu0 0.0
        %1137 = vmatpush.msra.mxu0 0.0
        %1138 = vmatpush.msra.mxu0 0.0
        %1139 = vmatpush.msra.mxu0 0.0
        %1140 = vmatpush.msra.mxu0 0.0
        %1141 = vmatpush.msra.mxu0 0.0
        %1142 = vmatpush.msra.mxu0 %v198
        %1143 = vmatpush.msra.mxu0 %v197
        %1144 = vmatpush.msra.mxu0 %v196
        %1145 = vmatpush.msra.mxu0 %v195
        %1146 = vmatmul.f32.gmra.mxu0 %v1045
        %v1147 = vpop.f32.mrf.mxu0
        %v1148 = vadd.f32 %v1128, %v1147
        %1149 = vdwg.mxu0
        %v1150 = vadd.f32 %v1148, %v201
        %v1151 = vxor.u32 %v1150, 2147483648
        %v1152 = vmul.f32 %v1151, 1.442695
        %v1153 = vpow.pop %v1152
        %v1154 = vadd.f32 %v1153, 1.0
        %v1155 = vrcp.pop %v1154
        %v1156 = vmul.f32 %v1154, %v1155
        %v1157 = vsub.f32 1.0, %v1156
        %v1158 = vmul.f32 %v1155, %v1157
        %v1159 = vadd.f32 %v1155, %v1158
        %vm1160 = vweird.f32 %v1154
        %vm1161 = vweird.f32 %v1155
        %vm1162 = vmor %vm1160, %vm1161
        %v1163 = vsel %vm1162, %v1155, %v1159
        %v1164 = vand.u32 2147483647, %v1154
        %vm1165 = vcmp.eq.f32.partialorder %v1164, 8.507059e+37
        %v1166 = vand.u32 %v1154, 2147483648
        %v1167 = vor.u32 1.1754944e-38, %v1166
        %v1168 = vsel %vm1165, %v1167, %v1163
        %v1169 = vmul.f32 1.0, %v1168
        %v1170 = vtanh.pop %v1150
        %v1171 = vmul.f32 %v1169, %v1015
        %1173 = vrot.lane.b32.xlu0 %v1170, 64
        %v1174 = vpop.permute.xlu0 %1173
        %v1176 = vmul.f32 %v1169, %v1174
        %1178 = vrot.lane.b32.xlu0 %v1176, 32
        %v1179 = vpop.permute.xlu0 %1178
        %v1181 = vadd.f32 %v1171, %v1179
        %v1182 = vtanh.pop %v1181
        %1184 = vrot.lane.b32.xlu0 %v1182, 64
        %v1185 = vpop.permute.xlu0 %1184
        %v1187 = vmul.f32 %v1169, %v1185
        %1188 = vmatpush.msra.mxu0 0.0
        %1189 = vmatpush.msra.mxu0 0.0
        %1190 = vmatpush.msra.mxu0 0.0
        %1191 = vmatpush.msra.mxu0 0.0
        %1192 = vmatpush.msra.mxu0 0.0
        %1193 = vmatpush.msra.mxu0 0.0
        %1194 = vmatpush.msra.mxu0 0.0
        %1195 = vmatpush.msra.mxu0 0.0
        %1196 = vmatpush.msra.mxu0 0.0
        %1197 = vmatpush.msra.mxu0 0.0
        %1198 = vmatpush.msra.mxu0 0.0
        %1199 = vmatpush.msra.mxu0 0.0
        %1200 = vmatpush.msra.mxu0 %v190
        %1201 = vmatpush.msra.mxu0 %v189
        %1202 = vmatpush.msra.mxu0 %v188
        %1203 = vmatpush.msra.mxu0 %v187
        %1204 = vmatmul.f32.gmra.mxu0 %v1108
        %v1205 = vpop.f32.mrf.mxu0
        %v1206 = vadd.f32 0.0, %v1205
        %1207 = vdwg.mxu0
        %1209 = vrot.lane.b32.xlu0 %v1187, 32
        %v1210 = vpop.permute.xlu0 %1209
        %v1211 = vsel %vm203, %v1210, 0
        %1213 = vmatpush.msra.mxu0 0.0
        %1214 = vmatpush.msra.mxu0 0.0
        %1215 = vmatpush.msra.mxu0 0.0
        %1216 = vmatpush.msra.mxu0 0.0
        %1217 = vmatpush.msra.mxu0 0.0
        %1218 = vmatpush.msra.mxu0 0.0
        %1219 = vmatpush.msra.mxu0 0.0
        %1220 = vmatpush.msra.mxu0 0.0
        %1221 = vmatpush.msra.mxu0 0.0
        %1222 = vmatpush.msra.mxu0 0.0
        %1223 = vmatpush.msra.mxu0 0.0
        %1224 = vmatpush.msra.mxu0 0.0
        %1225 = vmatpush.msra.mxu0 %v186
        %1226 = vmatpush.msra.mxu0 %v185
        %1227 = vmatpush.msra.mxu0 %v184
        %1228 = vmatpush.msra.mxu0 %v183
        %1229 = vmatmul.f32.gmra.mxu0 %v1211
        %v1230 = vpop.f32.mrf.mxu0
        %v1231 = vadd.f32 %v1206, %v1230
        %1232 = vdwg.mxu0
        %v1233 = vadd.f32 %v1231, %v200
        %v1234 = vxor.u32 %v1233, 2147483648
        %v1235 = vmul.f32 %v1234, 1.442695
        %v1236 = vpow.pop %v1235
        %v1237 = vadd.f32 %v1236, 1.0
        %v1238 = vrcp.pop %v1237
        %v1239 = vmul.f32 %v1237, %v1238
        %v1240 = vsub.f32 1.0, %v1239
        %v1241 = vmul.f32 %v1238, %v1240
        %v1242 = vadd.f32 %v1238, %v1241
        %vm1243 = vweird.f32 %v1237
        %vm1244 = vweird.f32 %v1238
        %vm1245 = vmor %vm1243, %vm1244
        %v1246 = vsel %vm1245, %v1238, %v1242
        %v1247 = vand.u32 2147483647, %v1237
        %vm1248 = vcmp.eq.f32.partialorder %v1247, 8.507059e+37
        %v1249 = vand.u32 %v1237, 2147483648
        %v1250 = vor.u32 1.1754944e-38, %v1249
        %v1251 = vsel %vm1248, %v1250, %v1246
        %v1252 = vmul.f32 1.0, %v1251
        %v1253 = vtanh.pop %v1233
        %v1254 = vmul.f32 %v1252, %v1098
        %1256 = vrot.lane.b32.xlu0 %v1253, 64
        %v1257 = vpop.permute.xlu0 %1256
        %v1259 = vmul.f32 %v1252, %v1257
        %1261 = vrot.lane.b32.xlu0 %v1259, 32
        %v1262 = vpop.permute.xlu0 %1261
        %v1264 = vadd.f32 %v1254, %v1262
        %v1265 = vtanh.pop %v1264
        %1267 = vrot.lane.b32.xlu0 %v1265, 64
        %v1268 = vpop.permute.xlu0 %1267
        %v1270 = vmul.f32 %v1252, %v1268
        %1272 = vrot.lane.b32.xlu0 %v1270, 32
        %v1273 = vpop.permute.xlu0 %1272
        %v1274 = vsel %vm203, %v1273, 0
        %1276 = vmatpush.msra.mxu0 0.0
        %1277 = vmatpush.msra.mxu0 0.0
        %1278 = vmatpush.msra.mxu0 0.0
        %1279 = vmatpush.msra.mxu0 0.0
        %1280 = vmatpush.msra.mxu0 0.0
        %1281 = vmatpush.msra.mxu0 0.0
        %1282 = vmatpush.msra.mxu0 0.0
        %1283 = vmatpush.msra.mxu0 0.0
        %1284 = vmatpush.msra.mxu0 0.0
        %1285 = vmatpush.msra.mxu0 0.0
        %1286 = vmatpush.msra.mxu0 0.0
        %1287 = vmatpush.msra.mxu0 0.0
        %1288 = vmatpush.msra.mxu0 %v194
        %1289 = vmatpush.msra.mxu0 %v193
        %1290 = vmatpush.msra.mxu0 %v192
        %1291 = vmatpush.msra.mxu0 %v191
        %1292 = vmatmul.f32.gmra.mxu0 %v1274
        %v1293 = vpop.f32.mrf.mxu0
        %v1294 = vadd.f32 0.0, %v1293
        %1295 = vdwg.mxu0
        %1296 = vmatpush.msra.mxu0 0.0
        %1297 = vmatpush.msra.mxu0 0.0
        %1298 = vmatpush.msra.mxu0 0.0
        %1299 = vmatpush.msra.mxu0 0.0
        %1300 = vmatpush.msra.mxu0 0.0
        %1301 = vmatpush.msra.mxu0 0.0
        %1302 = vmatpush.msra.mxu0 0.0
        %1303 = vmatpush.msra.mxu0 0.0
        %1304 = vmatpush.msra.mxu0 0.0
        %1305 = vmatpush.msra.mxu0 0.0
        %1306 = vmatpush.msra.mxu0 0.0
        %1307 = vmatpush.msra.mxu0 0.0
        %1308 = vmatpush.msra.mxu0 %v198
        %1309 = vmatpush.msra.mxu0 %v197
        %1310 = vmatpush.msra.mxu0 %v196
        %1311 = vmatpush.msra.mxu0 %v195
        %1312 = vmatmul.f32.gmra.mxu0 %v1211
        %v1313 = vpop.f32.mrf.mxu0
        %v1314 = vadd.f32 %v1294, %v1313
        %1315 = vdwg.mxu0
        %v1316 = vadd.f32 %v1314, %v201
        %v1317 = vxor.u32 %v1316, 2147483648
        %v1318 = vmul.f32 %v1317, 1.442695
        %v1319 = vpow.pop %v1318
        %v1320 = vadd.f32 %v1319, 1.0
        %v1321 = vrcp.pop %v1320
        %v1322 = vmul.f32 %v1320, %v1321
        %v1323 = vsub.f32 1.0, %v1322
        %v1324 = vmul.f32 %v1321, %v1323
        %v1325 = vadd.f32 %v1321, %v1324
        %vm1326 = vweird.f32 %v1320
        %vm1327 = vweird.f32 %v1321
        %vm1328 = vmor %vm1326, %vm1327
        %v1329 = vsel %vm1328, %v1321, %v1325
        %v1330 = vand.u32 2147483647, %v1320
        %vm1331 = vcmp.eq.f32.partialorder %v1330, 8.507059e+37
        %v1332 = vand.u32 %v1320, 2147483648
        %v1333 = vor.u32 1.1754944e-38, %v1332
        %v1334 = vsel %vm1331, %v1333, %v1329
        %v1335 = vmul.f32 1.0, %v1334
        %v1336 = vtanh.pop %v1316
        %v1337 = vmul.f32 %v1335, %v1181
        %1339 = vrot.lane.b32.xlu0 %v1336, 64
        %v1340 = vpop.permute.xlu0 %1339
        %v1342 = vmul.f32 %v1335, %v1340
        %1344 = vrot.lane.b32.xlu0 %v1342, 32
        %v1345 = vpop.permute.xlu0 %1344
        %v1347 = vadd.f32 %v1337, %v1345
        %v1348 = vtanh.pop %v1347
        %1350 = vrot.lane.b32.xlu0 %v1348, 64
        %v1351 = vpop.permute.xlu0 %1350
        %v1353 = vmul.f32 %v1335, %v1351
        %1354 = vmatpush.msra.mxu0 0.0
        %1355 = vmatpush.msra.mxu0 0.0
        %1356 = vmatpush.msra.mxu0 0.0
        %1357 = vmatpush.msra.mxu0 0.0
        %1358 = vmatpush.msra.mxu0 0.0
        %1359 = vmatpush.msra.mxu0 0.0
        %1360 = vmatpush.msra.mxu0 0.0
        %1361 = vmatpush.msra.mxu0 0.0
        %1362 = vmatpush.msra.mxu0 0.0
        %1363 = vmatpush.msra.mxu0 0.0
        %1364 = vmatpush.msra.mxu0 0.0
        %1365 = vmatpush.msra.mxu0 0.0
        %1366 = vmatpush.msra.mxu0 %v190
        %1367 = vmatpush.msra.mxu0 %v189
        %1368 = vmatpush.msra.mxu0 %v188
        %1369 = vmatpush.msra.mxu0 %v187
        %1370 = vmatmul.f32.gmra.mxu0 %v1274
        %v1371 = vpop.f32.mrf.mxu0
        %v1372 = vadd.f32 0.0, %v1371
        %1373 = vdwg.mxu0
        %1375 = vrot.lane.b32.xlu0 %v1353, 32
        %v1376 = vpop.permute.xlu0 %1375
        %v1377 = vsel %vm203, %v1376, 0
        %1379 = vmatpush.msra.mxu0 0.0
        %1380 = vmatpush.msra.mxu0 0.0
        %1381 = vmatpush.msra.mxu0 0.0
        %1382 = vmatpush.msra.mxu0 0.0
        %1383 = vmatpush.msra.mxu0 0.0
        %1384 = vmatpush.msra.mxu0 0.0
        %1385 = vmatpush.msra.mxu0 0.0
        %1386 = vmatpush.msra.mxu0 0.0
        %1387 = vmatpush.msra.mxu0 0.0
        %1388 = vmatpush.msra.mxu0 0.0
        %1389 = vmatpush.msra.mxu0 0.0
        %1390 = vmatpush.msra.mxu0 0.0
        %1391 = vmatpush.msra.mxu0 %v186
        %1392 = vmatpush.msra.mxu0 %v185
        %1393 = vmatpush.msra.mxu0 %v184
        %1394 = vmatpush.msra.mxu0 %v183
        %1395 = vmatmul.f32.gmra.mxu0 %v1377
        %v1396 = vpop.f32.mrf.mxu0
        %v1397 = vadd.f32 %v1372, %v1396
        %1398 = vdwg.mxu0
        %v1399 = vadd.f32 %v1397, %v200
        %v1400 = vxor.u32 %v1399, 2147483648
        %v1401 = vmul.f32 %v1400, 1.442695
        %v1402 = vpow.pop %v1401
        %v1403 = vadd.f32 %v1402, 1.0
        %v1404 = vrcp.pop %v1403
        %v1405 = vmul.f32 %v1403, %v1404
        %v1406 = vsub.f32 1.0, %v1405
        %v1407 = vmul.f32 %v1404, %v1406
        %v1408 = vadd.f32 %v1404, %v1407
        %vm1409 = vweird.f32 %v1403
        %vm1410 = vweird.f32 %v1404
        %vm1411 = vmor %vm1409, %vm1410
        %v1412 = vsel %vm1411, %v1404, %v1408
        %v1413 = vand.u32 2147483647, %v1403
        %vm1414 = vcmp.eq.f32.partialorder %v1413, 8.507059e+37
        %v1415 = vand.u32 %v1403, 2147483648
        %v1416 = vor.u32 1.1754944e-38, %v1415
        %v1417 = vsel %vm1414, %v1416, %v1412
        %v1418 = vmul.f32 1.0, %v1417
        %v1419 = vtanh.pop %v1399
        %v1420 = vmul.f32 %v1418, %v1264
        %1422 = vrot.lane.b32.xlu0 %v1419, 64
        %v1423 = vpop.permute.xlu0 %1422
        %v1425 = vmul.f32 %v1418, %v1423
        %1427 = vrot.lane.b32.xlu0 %v1425, 32
        %v1428 = vpop.permute.xlu0 %1427
        %v1430 = vadd.f32 %v1420, %v1428
        %v1431 = vtanh.pop %v1430
        %1433 = vrot.lane.b32.xlu0 %v1431, 64
        %v1434 = vpop.permute.xlu0 %1433
        %v1436 = vmul.f32 %v1418, %v1434
        %1438 = vrot.lane.b32.xlu0 %v1436, 32
        %v1439 = vpop.permute.xlu0 %1438
        %v1440 = vsel %vm203, %v1439, 0
        %1442 = vmatpush.msra.mxu0 0.0
        %1443 = vmatpush.msra.mxu0 0.0
        %1444 = vmatpush.msra.mxu0 0.0
        %1445 = vmatpush.msra.mxu0 0.0
        %1446 = vmatpush.msra.mxu0 0.0
        %1447 = vmatpush.msra.mxu0 0.0
        %1448 = vmatpush.msra.mxu0 0.0
        %1449 = vmatpush.msra.mxu0 0.0
        %1450 = vmatpush.msra.mxu0 0.0
        %1451 = vmatpush.msra.mxu0 0.0
        %1452 = vmatpush.msra.mxu0 0.0
        %1453 = vmatpush.msra.mxu0 0.0
        %1454 = vmatpush.msra.mxu0 %v194
        %1455 = vmatpush.msra.mxu0 %v193
        %1456 = vmatpush.msra.mxu0 %v192
        %1457 = vmatpush.msra.mxu0 %v191
        %1458 = vmatmul.f32.gmra.mxu0 %v1440
        %v1459 = vpop.f32.mrf.mxu0
        %v1460 = vadd.f32 0.0, %v1459
        %1461 = vdwg.mxu0
        %1462 = vmatpush.msra.mxu0 0.0
        %1463 = vmatpush.msra.mxu0 0.0
        %1464 = vmatpush.msra.mxu0 0.0
        %1465 = vmatpush.msra.mxu0 0.0
        %1466 = vmatpush.msra.mxu0 0.0
        %1467 = vmatpush.msra.mxu0 0.0
        %1468 = vmatpush.msra.mxu0 0.0
        %1469 = vmatpush.msra.mxu0 0.0
        %1470 = vmatpush.msra.mxu0 0.0
        %1471 = vmatpush.msra.mxu0 0.0
        %1472 = vmatpush.msra.mxu0 0.0
        %1473 = vmatpush.msra.mxu0 0.0
        %1474 = vmatpush.msra.mxu0 %v198
        %1475 = vmatpush.msra.mxu0 %v197
        %1476 = vmatpush.msra.mxu0 %v196
        %1477 = vmatpush.msra.mxu0 %v195
        %1478 = vmatmul.f32.gmra.mxu0 %v1377
        %v1479 = vpop.f32.mrf.mxu0
        %v1480 = vadd.f32 %v1460, %v1479
        %1481 = vdwg.mxu0
        %v1482 = vadd.f32 %v1480, %v201
        %v1483 = vxor.u32 %v1482, 2147483648
        %v1484 = vmul.f32 %v1483, 1.442695
        %v1485 = vpow.pop %v1484
        %v1486 = vadd.f32 %v1485, 1.0
        %v1487 = vrcp.pop %v1486
        %v1488 = vmul.f32 %v1486, %v1487
        %v1489 = vsub.f32 1.0, %v1488
        %v1490 = vmul.f32 %v1487, %v1489
        %v1491 = vadd.f32 %v1487, %v1490
        %vm1492 = vweird.f32 %v1486
        %vm1493 = vweird.f32 %v1487
        %vm1494 = vmor %vm1492, %vm1493
        %v1495 = vsel %vm1494, %v1487, %v1491
        %v1496 = vand.u32 2147483647, %v1486
        %vm1497 = vcmp.eq.f32.partialorder %v1496, 8.507059e+37
        %v1498 = vand.u32 %v1486, 2147483648
        %v1499 = vor.u32 1.1754944e-38, %v1498
        %v1500 = vsel %vm1497, %v1499, %v1495
        %v1501 = vmul.f32 1.0, %v1500
        %v1502 = vtanh.pop %v1482
        %v1503 = vmul.f32 %v1501, %v1347
        %1505 = vrot.lane.b32.xlu0 %v1502, 64
        %v1506 = vpop.permute.xlu0 %1505
        %v1508 = vmul.f32 %v1501, %v1506
        %1510 = vrot.lane.b32.xlu0 %v1508, 32
        %v1511 = vpop.permute.xlu0 %1510
        %v1513 = vadd.f32 %v1503, %v1511
        %v1514 = vtanh.pop %v1513
        %1516 = vrot.lane.b32.xlu0 %v1514, 64
        %v1517 = vpop.permute.xlu0 %1516
        %v1519 = vmul.f32 %v1501, %v1517
        %v1520 = vrot.slane %v523, 7
        %v1522 = vrot.slane %v689, 6
        %v1524 = vrot.slane %v855, 5
        %v1526 = vrot.slane %v1021, 4
        %v1528 = vrot.slane %v1187, 3
        %v1530 = vrot.slane %v1353, 2
        %v1533 = vrot.slane %v1519, 1
        %vm1535 = vcmask 1040384
        %v1536 = vsel %vm1535, %v357, %v1520
        %vm1537 = vcmask 1041408
        %v1538 = vsel %vm1537, %v1536, %v1522
        %vm1539 = vcmask 1042432
        %v1540 = vsel %vm1539, %v1538, %v1524
        %vm1541 = vcmask 1043456
        %v1542 = vsel %vm1541, %v1540, %v1526
        %vm1543 = vcmask 1044480
        %v1544 = vsel %vm1543, %v1542, %v1528
        %vm1545 = vcmask 1045504
        %v1546 = vsel %vm1545, %v1544, %v1530
        %vm1547 = vcmask 1046528
        %v1548 = vsel %vm1547, %v1546, %v1533
        %1550 = vrot.lane.b32.xlu0 %v1548, 32
        %v1551 = vpop.permute.xlu0 %1550
        %1553 = vst.msk [vmem:[%s182] sm:$0xff] %vm203, %v1551
        %p1554 = scmp.lt.s32.totalorder %s15, 1
        %s1555 = scalar_select %p1554, %s15, 1
        %s1556 = smul.addr %s1555, 8
        %s1557 = scalar_lea.vmem %s3, %s1556
        // Predicated region
        $region37: #{dlstm_forward.1} parent=31 // pred_check
          %p1558 = pneg %p101
        $region38: #{dlstm_forward.1} parent=31 // pred_check_branch
          %1560 = sbr.rel (%p1558) target = $region40
        $region39: #{dlstm_forward.1} parent=31 // pred_region
          _
        $region40: #{dlstm_forward.1} parent=31 // pred_fallthru
          _
      $region32: #{dlstm_forward.1} parent=5 // pred_fallthru
        _
      %p1561 = scmp.le.s32.totalorder 2, %s10
      // Predicated region
      $region41: #{dlstm_forward.1} parent=5 // pred_check
        %p1562 = pneg %p1561
      $region42: #{dlstm_forward.1} parent=5 // pred_check_branch
        %1564 = sbr.rel (%p1562) target = $region44
      $region43: #{dlstm_forward.1} parent=5 // pred_region
        %s1565 = ssub.s32 %s10, 2
        // Predicated region
        $region45: #{dlstm_forward.1} parent=43 // pred_check
          %p1566 = pneg %p107
        $region46: #{dlstm_forward.1} parent=43 // pred_check_branch
          %1568 = sbr.rel (%p1566) target = $region48
        $region47: #{dlstm_forward.1} parent=43 // pred_region
          %p1569 = scmp.lt.s32.totalorder %s16, 1
          %s1570 = scalar_select %p1569, %s16, 1
          %s1571 = smul.addr %s1570, 8
          %s1572 = scalar_lea.vmem %s3, %s1571
        $region48: #{dlstm_forward.1} parent=43 // pred_fallthru
          _
      $region44: #{dlstm_forward.1} parent=5 // pred_fallthru
        _
    $region6: #{dlstm_forward.1} parent=1 // loop_footer
      %s14 = sadd.s32 1, %s10
    $region7: #{dlstm_forward.1} parent=1 // loop_footer_branch
      %9 = sbr.rel target = $region3
    $region8: #{dlstm_forward.1} parent=1 // loop_exit
      _
    %1573 = vsyncpa [#allocation3], 1
    %s1574 = scalar_lea.sflag [#allocation3], 1
    %1575 = vsyncpa %s1574, 1

</llo_original>
